<compile_context>
chip_gen: v7x
topology: tpu7x:2x2x1
jax: 0.10.0
libtpu: 0.0.40
codegen_flags: <defaults>
</compile_context>

<pallas_src>
import functools

import jax
import jax.numpy as jnp
from jax.experimental import pallas as pl
from jax.experimental.pallas import tpu as pltpu


def get_padding(kernel_size: int) -> int:
    return (kernel_size - 1) // 2


def _round_up(x: int, m: int) -> int:
    return ((x + m - 1) // m) * m


def _pick_group(B, N, C_in, C_out, K, CP, itemsize):
    """Pack batch elements per grid step so the matmul N-dim is wide
    (>= 512 lanes) while keeping scratch + double-buffered I/O well inside
    the scoped VMEM budget (also fits v7x's smaller 64 MiB VMEM)."""
    budget = 20 * 2 ** 20
    best = 1
    for bg in range(1, B + 1):
        if B % bg:
            continue
        bgn = bg * N
        need = (K * K * CP * bgn            # cols scratch
                + CP * (bgn + 512)          # staging slab (margins rounded up)
                + 2 * bg * (C_in + C_out) * N) * itemsize  # double-buffered I/O
        if need > budget:
            break
        best = bg
        if bgn >= 512:
            break
    return best


def _sepconv_kernel(x_ref, mask_ref, w1_ref, w2_ref, b_ref, o_ref,
                    xext_ref, cols_ref,
                    *, H, W, K, pad, BG, C_in, C_out, CP, ZL):
    # x_ref:    (BG, C_in, N)       batch group, lane-dense flat layout
    # mask_ref: (K*K, BG*N) f32     per-tap boundary-validity masks (0/1)
    # w1_ref:   (CP, K*K*CP)        KxK conv weight, im2col order, 0-padded
    # w2_ref:   (CO, CP)            1x1 pointwise weight, 0-padded
    # b_ref:    (CO, 1)             fused bias (w2 @ b1 + b2), 0-padded
    # o_ref:    (BG, C_out, N)
    # xext_ref: (CP, XW)            staging slab; interior at lanes [ZL, ZL+BG*N)
    # cols_ref: (K*K*CP, BG*N)      im2col patch matrix
    N = H * W
    BGN = BG * N

    # Stage the batch group.  ZL is a multiple of 128 and N a multiple of 128,
    # so every interior store is lane-aligned.  Padded channel rows are zeroed
    # each step (tiny) so they feed the zero weight columns with exact zeros.
    for b in range(BG):
        xext_ref[0:C_in, ZL + b * N: ZL + (b + 1) * N] = x_ref[b]
    if CP > C_in:
        xext_ref[C_in:CP, ZL:ZL + BGN] = jnp.zeros((CP - C_in, BGN),
                                                   dtype=xext_ref.dtype)

    # im2col: one lane-shifted, boundary-masked, 8-sublane-aligned slab store
    # per tap.  The select against the precomputed mask zeroes every lane whose
    # source crosses an image/row boundary (incl. the never-initialised staging
    # margins), which realises the conv zero padding exactly.
    for dy in range(K):
        sy = dy - pad
        for dx in range(K):
            sx = dx - pad
            off = sy * W + sx
            tap = dy * K + dx
            shifted = xext_ref[:, ZL + off: ZL + off + BGN]      # (CP, BGN)
            if not (sy == 0 and sx == 0):
                m = mask_ref[tap:tap + 1, :]                     # (1, BGN)
                shifted = jnp.where(m > 0.5, shifted, 0.0)
            cols_ref[tap * CP:(tap + 1) * CP, :] = shifted

    # KxK conv + 1x1 pointwise conv as two lane-dense MXU matmuls; fused bias.
    hidden = jnp.dot(w1_ref[...], cols_ref[...],
                     preferred_element_type=jnp.float32,
                     precision=jax.lax.Precision.HIGHEST)        # (CP, BGN)
    out = jnp.dot(w2_ref[...], hidden,
                  preferred_element_type=jnp.float32,
                  precision=jax.lax.Precision.HIGHEST)           # (CO, BGN)
    out = (out + b_ref[...]).astype(o_ref.dtype)
    for b in range(BG):
        o_ref[b] = out[0:C_out, b * N:(b + 1) * N]


def separable_convolution(x, w1, b1, w2, b2, *, kernel_size):
    """x: (B, C_in, H, W) NCHW.  Returns (B, C_out, H, W)."""
    B, C_in, H, W = x.shape
    C_out = w2.shape[0]
    K = kernel_size
    if K % 2 != 1:
        raise ValueError("separable_convolution: kernel_size must be odd")
    pad = get_padding(K)
    N = H * W

    CP = _round_up(C_in, 8)          # sublane-padded channel count
    CO = _round_up(C_out, 8)
    KKC = K * K * CP                 # contraction dim (multiple of 8)

    itemsize = jnp.dtype(x.dtype).itemsize
    BG = _pick_group(B, N, C_in, C_out, K, CP, itemsize)
    G = B // BG
    BGN = BG * N

    margin = pad * (W + 1)                       # max |tap shift|
    ZL = _round_up(margin, 128) if margin else 0  # lane-aligned interior start
    XW = _round_up(ZL + BGN + margin, 128)

    # Layout-only glue on activations (reshape of contiguous trailing dims);
    # weight/bias/mask prep is tiny one-time XLA work.
    x_flat = x.reshape(B, C_in, N)

    # im2col weight order: w1_mat[o, (dy*K + dx)*CP + c] = w1[o, c, dy, dx],
    # zero-padded to (CP, K*K*CP).
    w1_t = jnp.transpose(w1, (0, 2, 3, 1))                       # (C_in,K,K,C_in)
    w1_mat = jnp.pad(w1_t, ((0, CP - C_in), (0, 0), (0, 0), (0, CP - C_in))
                     ).reshape(CP, KKC)
    w2_m = w2.reshape(C_out, C_in)
    w2_mat = jnp.pad(w2_m, ((0, CO - C_out), (0, CP - C_in)))    # (CO, CP)
    b_fused = jnp.pad(w2_m @ b1 + b2, (0, CO - C_out)).reshape(CO, 1)

    # Per-tap boundary masks over the concatenated batch lanes (precomputed
    # once here instead of per-tap compare/and/broadcast chains in the kernel).
    pos = jnp.arange(BGN, dtype=jnp.int32)
    col = pos % W
    row = (pos % N) // W
    masks = []
    for dy in range(K):
        for dx in range(K):
            sy, sx = dy - pad, dx - pad
            ok = ((row + sy >= 0) & (row + sy < H) &
                  (col + sx >= 0) & (col + sx < W))
            masks.append(ok)
    mask_arr = jnp.stack(masks).astype(jnp.float32)              # (K*K, BGN)

    kern = functools.partial(_sepconv_kernel, H=H, W=W, K=K, pad=pad, BG=BG,
                             C_in=C_in, C_out=C_out, CP=CP, ZL=ZL)

    out_flat = pl.pallas_call(
        kern,
        out_shape=jax.ShapeDtypeStruct((B, C_out, N), x.dtype),
        grid_spec=pltpu.PrefetchScalarGridSpec(
            num_scalar_prefetch=0,
            grid=(G,),
            in_specs=[
                pl.BlockSpec((BG, C_in, N), lambda g: (g, 0, 0)),   # x
                pl.BlockSpec((K * K, BGN), lambda g: (0, 0)),       # masks
                pl.BlockSpec((CP, KKC), lambda g: (0, 0)),          # w1 (im2col)
                pl.BlockSpec((CO, CP), lambda g: (0, 0)),           # w2
                pl.BlockSpec((CO, 1), lambda g: (0, 0)),            # fused bias
            ],
            out_specs=pl.BlockSpec((BG, C_out, N), lambda g: (g, 0, 0)),
            scratch_shapes=[
                pltpu.VMEM((CP, XW), x.dtype),        # staging slab (+margins)
                pltpu.VMEM((KKC, BGN), x.dtype),      # im2col patches
            ],
        ),
        compiler_params=pltpu.CompilerParams(
            dimension_semantics=("parallel",),
            vmem_limit_bytes=32 * 1024 * 1024,
        ),
    )(x_flat, mask_arr, w1_mat, w2_mat, b_fused)

    return out_flat.reshape(B, C_out, H, W)


def _reference(x, w1, b1, w2, b2, pad):
    # Pure-JAX reference (XLA convs), NCHW / OIHW like PyTorch.
    y = jax.lax.conv_general_dilated(
        x, w1, window_strides=(1, 1), padding=[(pad, pad), (pad, pad)],
        dimension_numbers=('NCHW', 'OIHW', 'NCHW'))
    y = y + b1[None, :, None, None]
    z = jax.lax.conv_general_dilated(
        y, w2, window_strides=(1, 1), padding=[(0, 0), (0, 0)],
        dimension_numbers=('NCHW', 'OIHW', 'NCHW'))
    z = z + b2[None, :, None, None]
    return z


if __name__ == "__main__":
    B, C_in, C_out, H, W, K = 2, 4, 8, 16, 16, 3

    key = jax.random.PRNGKey(0)
    kx, k1, kb1, k2, kb2 = jax.random.split(key, 5)

    x = jax.random.normal(kx, (B, C_in, H, W), jnp.float32)
    # Deterministic synthetic parameters (shapes match nn.Conv2d weights/bias).
    w1 = jax.random.normal(k1, (C_in, C_in, K, K), jnp.float32) * 0.1
    b1 = jax.random.normal(kb1, (C_in,), jnp.float32) * 0.1
    w2 = jax.random.normal(k2, (C_out, C_in, 1, 1), jnp.float32) * 0.1
    b2 = jax.random.normal(kb2, (C_out,), jnp.float32) * 0.1

    out = separable_convolution(x, w1, b1, w2, b2, kernel_size=K)
    out = jax.block_until_ready(out)

    ref = _reference(x, w1, b1, w2, b2, get_padding(K))
    assert out.shape == (B, C_out, H, W)
    assert jnp.allclose(out, ref, atol=2e-4, rtol=2e-4), "mismatch vs reference"
    print("KERNEL_OK")
</pallas_src>

<mosaic_0001>
module attributes {stable_mosaic.version = 11 : i64} {
  func.func @_sepconv_kernel(%arg0: i32, %arg1: memref<2x4x256xf32, #tpu.memory_space<vmem>>, %arg2: memref<9x512xf32, #tpu.memory_space<vmem>>, %arg3: memref<8x72xf32, #tpu.memory_space<vmem>>, %arg4: memref<8x8xf32, #tpu.memory_space<vmem>>, %arg5: memref<8x1xf32, #tpu.memory_space<vmem>>, %arg6: memref<2x8x256xf32, #tpu.memory_space<vmem>>, %arg7: memref<8x768xf32, #tpu.memory_space<vmem>>, %arg8: memref<72x512xf32, #tpu.memory_space<vmem>>) attributes {dimension_semantics = [#tpu.dimension_semantics<parallel>], iteration_bounds = array<i64: 1>, scalar_prefetch = 0 : i64, scratch_operands = 2 : i64, tpu.core_type = #tpu.core_type<tc>, window_params = [{transform_indices = @transform_0, window_bounds = array<i64: 2, 4, 256>}, {pipeline_mode = #tpu.pipeline_mode<synchronous>, transform_indices = @transform_1, window_bounds = array<i64: 9, 512>}, {pipeline_mode = #tpu.pipeline_mode<synchronous>, transform_indices = @transform_2, window_bounds = array<i64: 8, 72>}, {pipeline_mode = #tpu.pipeline_mode<synchronous>, transform_indices = @transform_3, window_bounds = array<i64: 8, 8>}, {pipeline_mode = #tpu.pipeline_mode<synchronous>, transform_indices = @transform_4, window_bounds = array<i64: 8, 1>}, {transform_indices = @transform_5, window_bounds = array<i64: 2, 8, 256>}]} {
    %c0 = arith.constant 0 : index
    %c0_0 = arith.constant 0 : index
    %c0_1 = arith.constant 0 : index
    %0 = vector.load %arg1[%c0, %c0_0, %c0_1] : memref<2x4x256xf32, #tpu.memory_space<vmem>>, vector<1x4x256xf32>
    %1 = vector.shape_cast %0 : vector<1x4x256xf32> to vector<4x256xf32>
    %c0_2 = arith.constant 0 : index
    %c128 = arith.constant 128 : index
    %2 = vector.load %arg7[%c0_2, %c128] : memref<8x768xf32, #tpu.memory_space<vmem>>, vector<4x256xf32>
    tpu.vector_store %arg7[%c0_2, %c128], %1 {strides = array<i32>} : memref<8x768xf32, #tpu.memory_space<vmem>>, vector<4x256xf32>,
    %c1 = arith.constant 1 : index
    %c0_3 = arith.constant 0 : index
    %c0_4 = arith.constant 0 : index
    %3 = vector.load %arg1[%c1, %c0_3, %c0_4] : memref<2x4x256xf32, #tpu.memory_space<vmem>>, vector<1x4x256xf32>
    %4 = vector.shape_cast %3 : vector<1x4x256xf32> to vector<4x256xf32>
    %c0_5 = arith.constant 0 : index
    %c384 = arith.constant 384 : index
    %5 = vector.load %arg7[%c0_5, %c384] : memref<8x768xf32, #tpu.memory_space<vmem>>, vector<4x256xf32>
    tpu.vector_store %arg7[%c0_5, %c384], %4 {strides = array<i32>} : memref<8x768xf32, #tpu.memory_space<vmem>>, vector<4x256xf32>,
    %cst = arith.constant 0.000000e+00 : f32
    %6 = vector.broadcast %cst : f32 to vector<4x512xf32>
    %c4 = arith.constant 4 : index
    %c128_6 = arith.constant 128 : index
    %7 = vector.load %arg7[%c4, %c128_6] : memref<8x768xf32, #tpu.memory_space<vmem>>, vector<4x512xf32>
    tpu.vector_store %arg7[%c4, %c128_6], %6 {strides = array<i32>} : memref<8x768xf32, #tpu.memory_space<vmem>>, vector<4x512xf32>,
    %c0_7 = arith.constant 0 : index
    %c111 = arith.constant 111 : index
    %8 = vector.load %arg7[%c0_7, %c111] : memref<8x768xf32, #tpu.memory_space<vmem>>, vector<8x512xf32>
    %c0_8 = arith.constant 0 : index
    %c0_9 = arith.constant 0 : index
    %9 = vector.load %arg2[%c0_8, %c0_9] : memref<9x512xf32, #tpu.memory_space<vmem>>, vector<1x512xf32>
    %cst_10 = arith.constant 5.000000e-01 : f32
    %10 = vector.broadcast %cst_10 : f32 to vector<1x512xf32>
    %11 = arith.cmpf ogt, %9, %10 : vector<1x512xf32>
    %cst_11 = arith.constant 0.000000e+00 : f32
    %12 = vector.shape_cast %11 : vector<1x512xi1> to vector<1x512xi1>
    %13 = vector.broadcast %12 : vector<1x512xi1> to vector<8x512xi1>
    %14 = vector.broadcast %cst_11 : f32 to vector<8x512xf32>
    %15 = arith.select %13, %8, %14 : vector<8x512xi1>, vector<8x512xf32>
    %c0_12 = arith.constant 0 : index
    %c0_13 = arith.constant 0 : index
    %16 = vector.load %arg8[%c0_12, %c0_13] : memref<72x512xf32, #tpu.memory_space<vmem>>, vector<8x512xf32>
    tpu.vector_store %arg8[%c0_12, %c0_13], %15 {strides = array<i32>} : memref<72x512xf32, #tpu.memory_space<vmem>>, vector<8x512xf32>,
    %c0_14 = arith.constant 0 : index
    %c112 = arith.constant 112 : index
    %17 = vector.load %arg7[%c0_14, %c112] : memref<8x768xf32, #tpu.memory_space<vmem>>, vector<8x512xf32>
    %c1_15 = arith.constant 1 : index
    %c0_16 = arith.constant 0 : index
    %18 = vector.load %arg2[%c1_15, %c0_16] : memref<9x512xf32, #tpu.memory_space<vmem>>, vector<1x512xf32>
    %cst_17 = arith.constant 5.000000e-01 : f32
    %19 = vector.broadcast %cst_17 : f32 to vector<1x512xf32>
    %20 = arith.cmpf ogt, %18, %19 : vector<1x512xf32>
    %cst_18 = arith.constant 0.000000e+00 : f32
    %21 = vector.shape_cast %20 : vector<1x512xi1> to vector<1x512xi1>
    %22 = vector.broadcast %21 : vector<1x512xi1> to vector<8x512xi1>
    %23 = vector.broadcast %cst_18 : f32 to vector<8x512xf32>
    %24 = arith.select %22, %17, %23 : vector<8x512xi1>, vector<8x512xf32>
    %c8 = arith.constant 8 : index
    %c0_19 = arith.constant 0 : index
    %25 = vector.load %arg8[%c8, %c0_19] : memref<72x512xf32, #tpu.memory_space<vmem>>, vector<8x512xf32>
    tpu.vector_store %arg8[%c8, %c0_19], %24 {strides = array<i32>} : memref<72x512xf32, #tpu.memory_space<vmem>>, vector<8x512xf32>,
    %c0_20 = arith.constant 0 : index
    %c113 = arith.constant 113 : index
    %26 = vector.load %arg7[%c0_20, %c113] : memref<8x768xf32, #tpu.memory_space<vmem>>, vector<8x512xf32>
    %c2 = arith.constant 2 : index
    %c0_21 = arith.constant 0 : index
    %27 = vector.load %arg2[%c2, %c0_21] : memref<9x512xf32, #tpu.memory_space<vmem>>, vector<1x512xf32>
    %cst_22 = arith.constant 5.000000e-01 : f32
    %28 = vector.broadcast %cst_22 : f32 to vector<1x512xf32>
    %29 = arith.cmpf ogt, %27, %28 : vector<1x512xf32>
    %cst_23 = arith.constant 0.000000e+00 : f32
    %30 = vector.shape_cast %29 : vector<1x512xi1> to vector<1x512xi1>
    %31 = vector.broadcast %30 : vector<1x512xi1> to vector<8x512xi1>
    %32 = vector.broadcast %cst_23 : f32 to vector<8x512xf32>
    %33 = arith.select %31, %26, %32 : vector<8x512xi1>, vector<8x512xf32>
    %c16 = arith.constant 16 : index
    %c0_24 = arith.constant 0 : index
    %34 = vector.load %arg8[%c16, %c0_24] : memref<72x512xf32, #tpu.memory_space<vmem>>, vector<8x512xf32>
    tpu.vector_store %arg8[%c16, %c0_24], %33 {strides = array<i32>} : memref<72x512xf32, #tpu.memory_space<vmem>>, vector<8x512xf32>,
    %c0_25 = arith.constant 0 : index
    %c127 = arith.constant 127 : index
    %35 = vector.load %arg7[%c0_25, %c127] : memref<8x768xf32, #tpu.memory_space<vmem>>, vector<8x512xf32>
    %c3 = arith.constant 3 : index
    %c0_26 = arith.constant 0 : index
    %36 = vector.load %arg2[%c3, %c0_26] : memref<9x512xf32, #tpu.memory_space<vmem>>, vector<1x512xf32>
    %cst_27 = arith.constant 5.000000e-01 : f32
    %37 = vector.broadcast %cst_27 : f32 to vector<1x512xf32>
    %38 = arith.cmpf ogt, %36, %37 : vector<1x512xf32>
    %cst_28 = arith.constant 0.000000e+00 : f32
    %39 = vector.shape_cast %38 : vector<1x512xi1> to vector<1x512xi1>
    %40 = vector.broadcast %39 : vector<1x512xi1> to vector<8x512xi1>
    %41 = vector.broadcast %cst_28 : f32 to vector<8x512xf32>
    %42 = arith.select %40, %35, %41 : vector<8x512xi1>, vector<8x512xf32>
    %c24 = arith.constant 24 : index
    %c0_29 = arith.constant 0 : index
    %43 = vector.load %arg8[%c24, %c0_29] : memref<72x512xf32, #tpu.memory_space<vmem>>, vector<8x512xf32>
    tpu.vector_store %arg8[%c24, %c0_29], %42 {strides = array<i32>} : memref<72x512xf32, #tpu.memory_space<vmem>>, vector<8x512xf32>,
    %c0_30 = arith.constant 0 : index
    %c128_31 = arith.constant 128 : index
    %44 = vector.load %arg7[%c0_30, %c128_31] : memref<8x768xf32, #tpu.memory_space<vmem>>, vector<8x512xf32>
    %c32 = arith.constant 32 : index
    %c0_32 = arith.constant 0 : index
    %45 = vector.load %arg8[%c32, %c0_32] : memref<72x512xf32, #tpu.memory_space<vmem>>, vector<8x512xf32>
    tpu.vector_store %arg8[%c32, %c0_32], %44 {strides = array<i32>} : memref<72x512xf32, #tpu.memory_space<vmem>>, vector<8x512xf32>,
    %c0_33 = arith.constant 0 : index
    %c129 = arith.constant 129 : index
    %46 = vector.load %arg7[%c0_33, %c129] : memref<8x768xf32, #tpu.memory_space<vmem>>, vector<8x512xf32>
    %c5 = arith.constant 5 : index
    %c0_34 = arith.constant 0 : index
    %47 = vector.load %arg2[%c5, %c0_34] : memref<9x512xf32, #tpu.memory_space<vmem>>, vector<1x512xf32>
    %cst_35 = arith.constant 5.000000e-01 : f32
    %48 = vector.broadcast %cst_35 : f32 to vector<1x512xf32>
    %49 = arith.cmpf ogt, %47, %48 : vector<1x512xf32>
    %cst_36 = arith.constant 0.000000e+00 : f32
    %50 = vector.shape_cast %49 : vector<1x512xi1> to vector<1x512xi1>
    %51 = vector.broadcast %50 : vector<1x512xi1> to vector<8x512xi1>
    %52 = vector.broadcast %cst_36 : f32 to vector<8x512xf32>
    %53 = arith.select %51, %46, %52 : vector<8x512xi1>, vector<8x512xf32>
    %c40 = arith.constant 40 : index
    %c0_37 = arith.constant 0 : index
    %54 = vector.load %arg8[%c40, %c0_37] : memref<72x512xf32, #tpu.memory_space<vmem>>, vector<8x512xf32>
    tpu.vector_store %arg8[%c40, %c0_37], %53 {strides = array<i32>} : memref<72x512xf32, #tpu.memory_space<vmem>>, vector<8x512xf32>,
    %c0_38 = arith.constant 0 : index
    %c143 = arith.constant 143 : index
    %55 = vector.load %arg7[%c0_38, %c143] : memref<8x768xf32, #tpu.memory_space<vmem>>, vector<8x512xf32>
    %c6 = arith.constant 6 : index
    %c0_39 = arith.constant 0 : index
    %56 = vector.load %arg2[%c6, %c0_39] : memref<9x512xf32, #tpu.memory_space<vmem>>, vector<1x512xf32>
    %cst_40 = arith.constant 5.000000e-01 : f32
    %57 = vector.broadcast %cst_40 : f32 to vector<1x512xf32>
    %58 = arith.cmpf ogt, %56, %57 : vector<1x512xf32>
    %cst_41 = arith.constant 0.000000e+00 : f32
    %59 = vector.shape_cast %58 : vector<1x512xi1> to vector<1x512xi1>
    %60 = vector.broadcast %59 : vector<1x512xi1> to vector<8x512xi1>
    %61 = vector.broadcast %cst_41 : f32 to vector<8x512xf32>
    %62 = arith.select %60, %55, %61 : vector<8x512xi1>, vector<8x512xf32>
    %c48 = arith.constant 48 : index
    %c0_42 = arith.constant 0 : index
    %63 = vector.load %arg8[%c48, %c0_42] : memref<72x512xf32, #tpu.memory_space<vmem>>, vector<8x512xf32>
    tpu.vector_store %arg8[%c48, %c0_42], %62 {strides = array<i32>} : memref<72x512xf32, #tpu.memory_space<vmem>>, vector<8x512xf32>,
    %c0_43 = arith.constant 0 : index
    %c144 = arith.constant 144 : index
    %64 = vector.load %arg7[%c0_43, %c144] : memref<8x768xf32, #tpu.memory_space<vmem>>, vector<8x512xf32>
    %c7 = arith.constant 7 : index
    %c0_44 = arith.constant 0 : index
    %65 = vector.load %arg2[%c7, %c0_44] : memref<9x512xf32, #tpu.memory_space<vmem>>, vector<1x512xf32>
    %cst_45 = arith.constant 5.000000e-01 : f32
    %66 = vector.broadcast %cst_45 : f32 to vector<1x512xf32>
    %67 = arith.cmpf ogt, %65, %66 : vector<1x512xf32>
    %cst_46 = arith.constant 0.000000e+00 : f32
    %68 = vector.shape_cast %67 : vector<1x512xi1> to vector<1x512xi1>
    %69 = vector.broadcast %68 : vector<1x512xi1> to vector<8x512xi1>
    %70 = vector.broadcast %cst_46 : f32 to vector<8x512xf32>
    %71 = arith.select %69, %64, %70 : vector<8x512xi1>, vector<8x512xf32>
    %c56 = arith.constant 56 : index
    %c0_47 = arith.constant 0 : index
    %72 = vector.load %arg8[%c56, %c0_47] : memref<72x512xf32, #tpu.memory_space<vmem>>, vector<8x512xf32>
    tpu.vector_store %arg8[%c56, %c0_47], %71 {strides = array<i32>} : memref<72x512xf32, #tpu.memory_space<vmem>>, vector<8x512xf32>,
    %c0_48 = arith.constant 0 : index
    %c145 = arith.constant 145 : index
    %73 = vector.load %arg7[%c0_48, %c145] : memref<8x768xf32, #tpu.memory_space<vmem>>, vector<8x512xf32>
    %c8_49 = arith.constant 8 : index
    %c0_50 = arith.constant 0 : index
    %74 = vector.load %arg2[%c8_49, %c0_50] : memref<9x512xf32, #tpu.memory_space<vmem>>, vector<1x512xf32>
    %cst_51 = arith.constant 5.000000e-01 : f32
    %75 = vector.broadcast %cst_51 : f32 to vector<1x512xf32>
    %76 = arith.cmpf ogt, %74, %75 : vector<1x512xf32>
    %cst_52 = arith.constant 0.000000e+00 : f32
    %77 = vector.shape_cast %76 : vector<1x512xi1> to vector<1x512xi1>
    %78 = vector.broadcast %77 : vector<1x512xi1> to vector<8x512xi1>
    %79 = vector.broadcast %cst_52 : f32 to vector<8x512xf32>
    %80 = arith.select %78, %73, %79 : vector<8x512xi1>, vector<8x512xf32>
    %c64 = arith.constant 64 : index
    %c0_53 = arith.constant 0 : index
    %81 = vector.load %arg8[%c64, %c0_53] : memref<72x512xf32, #tpu.memory_space<vmem>>, vector<8x512xf32>
    tpu.vector_store %arg8[%c64, %c0_53], %80 {strides = array<i32>} : memref<72x512xf32, #tpu.memory_space<vmem>>, vector<8x512xf32>,
    %c0_54 = arith.constant 0 : index
    %c0_55 = arith.constant 0 : index
    %82 = vector.load %arg3[%c0_54, %c0_55] : memref<8x72xf32, #tpu.memory_space<vmem>>, vector<8x72xf32>
    %c0_56 = arith.constant 0 : index
    %c0_57 = arith.constant 0 : index
    %83 = vector.load %arg8[%c0_56, %c0_57] : memref<72x512xf32, #tpu.memory_space<vmem>>, vector<72x512xf32>
    %cst_58 = arith.constant dense<0.000000e+00> : vector<8x512xf32>
    %84 = tpu.matmul %82, %83, %cst_58 {dimension_numbers = #tpu.dot_dimension_numbers<[1], [0], [0], [1], [0, 0, 1, 1], [], []>, precision = #tpu.contract_precision<fp32>} : vector<8x72xf32>, vector<72x512xf32>, vector<8x512xf32> -> vector<8x512xf32>
    %c0_59 = arith.constant 0 : index
    %c0_60 = arith.constant 0 : index
    %85 = vector.load %arg4[%c0_59, %c0_60] : memref<8x8xf32, #tpu.memory_space<vmem>>, vector<8x8xf32>
    %cst_61 = arith.constant dense<0.000000e+00> : vector<8x512xf32>
    %86 = tpu.matmul %85, %84, %cst_61 {dimension_numbers = #tpu.dot_dimension_numbers<[1], [0], [0], [1], [0, 0, 1, 1], [], []>, precision = #tpu.contract_precision<fp32>} : vector<8x8xf32>, vector<8x512xf32>, vector<8x512xf32> -> vector<8x512xf32>
    %c0_62 = arith.constant 0 : index
    %c0_63 = arith.constant 0 : index
    %87 = vector.load %arg5[%c0_62, %c0_63] : memref<8x1xf32, #tpu.memory_space<vmem>>, vector<8x1xf32>
    %88 = vector.broadcast %87 : vector<8x1xf32> to vector<8x512xf32>
    %89 = arith.addf %86, %88 : vector<8x512xf32>
    %90 = vector.extract_strided_slice %89 {offsets = [0, 0], sizes = [8, 256], strides = [1, 1]} : vector<8x512xf32> to vector<8x256xf32>
    %c0_64 = arith.constant 0 : index
    %c0_65 = arith.constant 0 : index
    %c0_66 = arith.constant 0 : index
    %91 = vector.load %arg6[%c0_64, %c0_65, %c0_66] : memref<2x8x256xf32, #tpu.memory_space<vmem>>, vector<1x8x256xf32>
    %92 = vector.shape_cast %91 : vector<1x8x256xf32> to vector<8x256xf32>
    %93 = vector.shape_cast %90 : vector<8x256xf32> to vector<1x8x256xf32>
    tpu.vector_store %arg6[%c0_64, %c0_65, %c0_66], %93 {strides = array<i32>} : memref<2x8x256xf32, #tpu.memory_space<vmem>>, vector<1x8x256xf32>,
    %94 = vector.extract_strided_slice %89 {offsets = [0, 256], sizes = [8, 256], strides = [1, 1]} : vector<8x512xf32> to vector<8x256xf32>
    %c1_67 = arith.constant 1 : index
    %c0_68 = arith.constant 0 : index
    %c0_69 = arith.constant 0 : index
    %95 = vector.load %arg6[%c1_67, %c0_68, %c0_69] : memref<2x8x256xf32, #tpu.memory_space<vmem>>, vector<1x8x256xf32>
    %96 = vector.shape_cast %95 : vector<1x8x256xf32> to vector<8x256xf32>
    %97 = vector.shape_cast %94 : vector<8x256xf32> to vector<1x8x256xf32>
    tpu.vector_store %arg6[%c1_67, %c0_68, %c0_69], %97 {strides = array<i32>} : memref<2x8x256xf32, #tpu.memory_space<vmem>>, vector<1x8x256xf32>,
    return
  }
  func.func @transform_0(%arg0: i32) -> (i32, i32, i32) {
    %c0_i32 = arith.constant 0 : i32
    %c0_i32_0 = arith.constant 0 : i32
    %c0_i32_1 = arith.constant 0 : i32
    return %arg0, %c0_i32, %c0_i32_0 : i32, i32, i32
  }
  func.func @transform_1(%arg0: i32) -> (i32, i32) {
    %c0_i32 = arith.constant 0 : i32
    %c0_i32_0 = arith.constant 0 : i32
    %c0_i32_1 = arith.constant 0 : i32
    return %c0_i32, %c0_i32_0 : i32, i32
  }
  func.func @transform_2(%arg0: i32) -> (i32, i32) {
    %c0_i32 = arith.constant 0 : i32
    %c0_i32_0 = arith.constant 0 : i32
    %c0_i32_1 = arith.constant 0 : i32
    return %c0_i32, %c0_i32_0 : i32, i32
  }
  func.func @transform_3(%arg0: i32) -> (i32, i32) {
    %c0_i32 = arith.constant 0 : i32
    %c0_i32_0 = arith.constant 0 : i32
    %c0_i32_1 = arith.constant 0 : i32
    return %c0_i32, %c0_i32_0 : i32, i32
  }
  func.func @transform_4(%arg0: i32) -> (i32, i32) {
    %c0_i32 = arith.constant 0 : i32
    %c0_i32_0 = arith.constant 0 : i32
    %c0_i32_1 = arith.constant 0 : i32
    return %c0_i32, %c0_i32_0 : i32, i32
  }
  func.func @transform_5(%arg0: i32) -> (i32, i32, i32) {
    %c0_i32 = arith.constant 0 : i32
    %c0_i32_0 = arith.constant 0 : i32
    %c0_i32_1 = arith.constant 0 : i32
    return %arg0, %c0_i32, %c0_i32_0 : i32, i32, i32
  }
}

</mosaic_0001>

<llo_original>
// kernel: tpu_custom_call.1
$region0: #{tpu_custom_call.1}
  #allocation0 [shape = 'u32[]', space=smem, size = 0x4, offset = 0x4, fixed_abs, tag = 'smem constant byte address 0x4 - core index']
  #allocation1 [shape = 'u32[144,128]{1,0:T(1,128)}', space=vmem, size = 0x12000, scoped, tag = 'internal scratch']
  #allocation2 [shape = 'f32[8,768]{1,0:T(8,128)}', space=vmem, size = 0x6000, scoped, tag = 'scratch operand']
  #allocation3 [shape = 'f32[72,512]{1,0:T(8,128)}', space=vmem, size = 0x24000, scoped, tag = 'scratch operand']
  %s0 = inlined_call_operand.hbm [shape: f32[2,4,256], index: 0, kind: input, shape index: {}]
  %s1 = inlined_call_operand.hbm [shape: f32[9,512], index: 1, kind: input, shape index: {}]
  %s2 = inlined_call_operand.vmem [shape: f32[8,72], index: 2, kind: input, shape index: {}]
  %s3 = inlined_call_operand.vmem [shape: f32[8,8], index: 3, kind: input, shape index: {}]
  %s4 = inlined_call_operand.vmem [shape: f32[8,1], index: 4, kind: input, shape index: {}]
  %s5 = inlined_call_operand.hbm [shape: f32[2,8,256], index: 5, kind: output, shape index: {}]
  %s6 = sld [smem:[#allocation0]]
  $region38: #{tpu_custom_call.1} parent=0
    _
  %s8 = ssub.s32 1, %s6
  %s9 = scalar_select 0, %s8, %s6
  $region1: #{tpu_custom_call.1} parent=0
    #allocation4 [shape = 'u8[8192]{0}', space=vmem, size = 0x2000, scoped, tag = 'input window, operand 0, single buffered']
    #allocation5 [shape = 's32[1]{0}', space=sflag, size = 0x4, scoped, tag = 'scoped memory for tpu_custom_call.1']
    #allocation6 [shape = 's32[1]{0}', space=sflag, size = 0x4, scoped, tag = 'scoped memory for tpu_custom_call.1']
    #allocation7 [shape = 'u8[32768]{0}', space=vmem, size = 0x8000, scoped, tag = 'input window, operand 1, single buffered']
    #allocation8 [shape = 's32[1]{0}', space=sflag, size = 0x4, scoped, tag = 'scoped memory for tpu_custom_call.1']
    #allocation9 [shape = 'u8[16384]{0}', space=vmem, size = 0x4000, scoped, tag = 'output window, operand 0, single buffered']
    %10 = vsyncpa [#allocation5], 0
    %11 = vsyncpa [#allocation8], 0
    %12 = vsyncpa [#allocation6], 0
    // Predicated region
    $region2: #{tpu_custom_call.1} parent=1 // pred_check
      _
    $region3: #{tpu_custom_call.1} parent=1 // pred_check_branch
      %14 = sbr.rel (0) target = $region5
    $region4: #{tpu_custom_call.1} parent=1 // pred_region
      %s16 = ssub.s32 256, 256
      %17 = vsyncadd [#allocation5], %s16
      %s18 = sshll.u32 [#allocation4], 4
      %s19 = int_to_ptr.vmem [resolvable:$true] %s18
      %24 = dma.hbm_to_vmem [thread:$0]  %s0, 256, %s19, [#allocation5], 128, 128, 8
    $region5: #{tpu_custom_call.1} parent=1 // pred_fallthru
      _
    // Predicated region
    $region6: #{tpu_custom_call.1} parent=1 // pred_check
      _
    $region7: #{tpu_custom_call.1} parent=1 // pred_check_branch
      %26 = sbr.rel (0) target = $region9
    $region8: #{tpu_custom_call.1} parent=1 // pred_region
      %s28 = ssub.s32 1024, 1024
      %29 = vsyncadd [#allocation8], %s28
      %s30 = sshll.u32 [#allocation7], 4
      %s31 = int_to_ptr.vmem [resolvable:$true] %s30
      %36 = dma.hbm_to_vmem [thread:$0]  %s1, 1024, %s31, [#allocation8], 512, 512, 32
    $region9: #{tpu_custom_call.1} parent=1 // pred_fallthru
      _
    // Predicated region
    $region10: #{tpu_custom_call.1} parent=1 // pred_check
      _
    $region11: #{tpu_custom_call.1} parent=1 // pred_check_branch
      %38 = sbr.rel (0) target = $region13
    $region12: #{tpu_custom_call.1} parent=1 // pred_region
      _
    $region13: #{tpu_custom_call.1} parent=1 // pred_fallthru
      _
    // Predicated region
    $region14: #{tpu_custom_call.1} parent=1 // pred_check
      _
    $region15: #{tpu_custom_call.1} parent=1 // pred_check_branch
      %40 = sbr.rel (0) target = $region17
    $region16: #{tpu_custom_call.1} parent=1 // pred_region
      _
    $region17: #{tpu_custom_call.1} parent=1 // pred_fallthru
      _
    // Predicated region
    $region18: #{tpu_custom_call.1} parent=1 // pred_check
      _
    $region19: #{tpu_custom_call.1} parent=1 // pred_check_branch
      %42 = sbr.rel (0) target = $region21
    $region20: #{tpu_custom_call.1} parent=1 // pred_region
      _
    $region21: #{tpu_custom_call.1} parent=1 // pred_fallthru
      _
    // Predicated region
    $region22: #{tpu_custom_call.1} parent=1 // pred_check
      _
    $region23: #{tpu_custom_call.1} parent=1 // pred_check_branch
      %44 = sbr.rel (0) target = $region25
    $region24: #{tpu_custom_call.1} parent=1 // pred_region
      %45 = dma.done [#allocation5], 256
    $region25: #{tpu_custom_call.1} parent=1 // pred_fallthru
      _
    // Predicated region
    $region26: #{tpu_custom_call.1} parent=1 // pred_check
      _
    $region27: #{tpu_custom_call.1} parent=1 // pred_check_branch
      %47 = sbr.rel (0) target = $region29
    $region28: #{tpu_custom_call.1} parent=1 // pred_region
      %48 = dma.done [#allocation8], 1024
    $region29: #{tpu_custom_call.1} parent=1 // pred_fallthru
      _
    %v49 = vld [vmem:[#allocation4] sm:$0xff]
    %v51 = vcombine.high %v49, %v49
    %53 = vst [vmem:[#allocation2 + $0x8] sm:$0xf] %v49
    %54 = vst [vmem:[#allocation2 + $0x10] sm:$0xf] %v51
    %s55 = scalar_lea.vmem [#allocation4], 8
    %v56 = vld [vmem:[%s55] sm:$0xff]
    %v58 = vcombine.high %v56, %v56
    %60 = vst [vmem:[#allocation2 + $0x18] sm:$0xf] %v56
    %61 = vst [vmem:[#allocation2 + $0x20] sm:$0xf] %v58
    %62 = vst [vmem:[#allocation2 + $0x8] sm:$0xf0] 0.0
    %63 = vst [vmem:[#allocation2 + $0x10] sm:$0xf0] 0.0
    %64 = vst [vmem:[#allocation2 + $0x18] sm:$0xf0] 0.0
    %65 = vst [vmem:[#allocation2 + $0x20] sm:$0xf0] 0.0
    %v66 = vld [vmem:[#allocation2] sm:$0xff]
    %v67 = vld [vmem:[#allocation2 + $0x8] sm:$0xff]
    %v68 = vld [vmem:[#allocation2 + $0x10] sm:$0xff]
    %v69 = vld [vmem:[#allocation2 + $0x18] sm:$0xff]
    %v70 = vld [vmem:[#allocation2 + $0x20] sm:$0xff]
    %v71 = vld [vmem:[#allocation7] ss:$8 sm:$0xf]
    %vm72 = vcmp.gt.f32.partialorder %v71, 0.5
    %v73 = vsel %vm72, 1, 0
    %v74 = vlaneseq
    %v75 = vshrl.u32 %v74, 7
    %v76 = vsub.s32 0, %v75
    %v77 = vrot.slane %v73, %v76
    %v78 = vlaneseq
    %v79 = vshrl.u32 %v78, 7
    %v80 = vsub.s32 1, %v79
    %v81 = vrot.slane %v73, %v80
    %v82 = vlaneseq
    %v83 = vshrl.u32 %v82, 7
    %v84 = vsub.s32 2, %v83
    %v85 = vrot.slane %v73, %v84
    %v86 = vlaneseq
    %v87 = vshrl.u32 %v86, 7
    %v88 = vsub.s32 3, %v87
    %v89 = vrot.slane %v73, %v88
    %vm90 = vcmp.eq.s32.totalorder %v77, 1
    %vm91 = vcmp.eq.s32.totalorder %v81, 1
    %vm92 = vcmp.eq.s32.totalorder %v85, 1
    %vm93 = vcmp.eq.s32.totalorder %v89, 1
    %99 = vrot.lane.b32.xlu0 %v66, 17
    %v100 = vpop.permute.xlu0 %99
    %101 = vrot.lane.b32.xlu0 %v67, 17
    %v102 = vpop.permute.xlu0 %101
    %103 = vrot.lane.b32.xlu0 %v68, 17
    %v104 = vpop.permute.xlu0 %103
    %105 = vrot.lane.b32.xlu0 %v69, 17
    %v106 = vpop.permute.xlu0 %105
    %107 = vrot.lane.b32.xlu0 %v70, 17
    %v108 = vpop.permute.xlu0 %107
    %vm109 = vcmask 138240
    %v110 = vsel %vm109, %v100, %v102
    %v111 = vsel %vm109, %v102, %v104
    %v112 = vsel %vm109, %v104, %v106
    %v113 = vsel %vm109, %v106, %v108
    %v118 = vsel %vm90, %v110, 0.0
    %v119 = vsel %vm91, %v111, 0.0
    %v120 = vsel %vm92, %v112, 0.0
    %v121 = vsel %vm93, %v113, 0.0
    %122 = vst [vmem:[#allocation3] sm:$0xff] %v118
    %123 = vst [vmem:[#allocation3 + $0x8] sm:$0xff] %v119
    %124 = vst [vmem:[#allocation3 + $0x10] sm:$0xff] %v120
    %125 = vst [vmem:[#allocation3 + $0x18] sm:$0xff] %v121
    %v126 = vld [vmem:[#allocation2] sm:$0xff]
    %v127 = vld [vmem:[#allocation2 + $0x8] sm:$0xff]
    %v128 = vld [vmem:[#allocation2 + $0x10] sm:$0xff]
    %v129 = vld [vmem:[#allocation2 + $0x18] sm:$0xff]
    %v130 = vld [vmem:[#allocation2 + $0x20] sm:$0xff]
    %s131 = scalar_lea.vmem [#allocation7], 1
    %v132 = vld [vmem:[%s131] ss:$8 sm:$0xf]
    %vm133 = vcmp.gt.f32.partialorder %v132, 0.5
    %v134 = vsel %vm133, 1, 0
    %v135 = vlaneseq
    %v136 = vshrl.u32 %v135, 7
    %v137 = vsub.s32 0, %v136
    %v138 = vrot.slane %v134, %v137
    %v139 = vlaneseq
    %v140 = vshrl.u32 %v139, 7
    %v141 = vsub.s32 1, %v140
    %v142 = vrot.slane %v134, %v141
    %v143 = vlaneseq
    %v144 = vshrl.u32 %v143, 7
    %v145 = vsub.s32 2, %v144
    %v146 = vrot.slane %v134, %v145
    %v147 = vlaneseq
    %v148 = vshrl.u32 %v147, 7
    %v149 = vsub.s32 3, %v148
    %v150 = vrot.slane %v134, %v149
    %vm151 = vcmp.eq.s32.totalorder %v138, 1
    %vm152 = vcmp.eq.s32.totalorder %v142, 1
    %vm153 = vcmp.eq.s32.totalorder %v146, 1
    %vm154 = vcmp.eq.s32.totalorder %v150, 1
    %160 = vrot.lane.b32.xlu0 %v126, 16
    %v161 = vpop.permute.xlu0 %160
    %162 = vrot.lane.b32.xlu0 %v127, 16
    %v163 = vpop.permute.xlu0 %162
    %164 = vrot.lane.b32.xlu0 %v128, 16
    %v165 = vpop.permute.xlu0 %164
    %166 = vrot.lane.b32.xlu0 %v129, 16
    %v167 = vpop.permute.xlu0 %166
    %168 = vrot.lane.b32.xlu0 %v130, 16
    %v169 = vpop.permute.xlu0 %168
    %vm170 = vcmask 130048
    %v171 = vsel %vm170, %v161, %v163
    %v172 = vsel %vm170, %v163, %v165
    %v173 = vsel %vm170, %v165, %v167
    %v174 = vsel %vm170, %v167, %v169
    %v179 = vsel %vm151, %v171, 0.0
    %v180 = vsel %vm152, %v172, 0.0
    %v181 = vsel %vm153, %v173, 0.0
    %v182 = vsel %vm154, %v174, 0.0
    %183 = vst [vmem:[#allocation3 + $0x20] sm:$0xff] %v179
    %184 = vst [vmem:[#allocation3 + $0x28] sm:$0xff] %v180
    %185 = vst [vmem:[#allocation3 + $0x30] sm:$0xff] %v181
    %186 = vst [vmem:[#allocation3 + $0x38] sm:$0xff] %v182
    %v187 = vld [vmem:[#allocation2] sm:$0xff]
    %v188 = vld [vmem:[#allocation2 + $0x8] sm:$0xff]
    %v189 = vld [vmem:[#allocation2 + $0x10] sm:$0xff]
    %v190 = vld [vmem:[#allocation2 + $0x18] sm:$0xff]
    %v191 = vld [vmem:[#allocation2 + $0x20] sm:$0xff]
    %s192 = scalar_lea.vmem [#allocation7], 2
    %v193 = vld [vmem:[%s192] ss:$8 sm:$0xf]
    %vm194 = vcmp.gt.f32.partialorder %v193, 0.5
    %v195 = vsel %vm194, 1, 0
    %v196 = vlaneseq
    %v197 = vshrl.u32 %v196, 7
    %v198 = vsub.s32 0, %v197
    %v199 = vrot.slane %v195, %v198
    %v200 = vlaneseq
    %v201 = vshrl.u32 %v200, 7
    %v202 = vsub.s32 1, %v201
    %v203 = vrot.slane %v195, %v202
    %v204 = vlaneseq
    %v205 = vshrl.u32 %v204, 7
    %v206 = vsub.s32 2, %v205
    %v207 = vrot.slane %v195, %v206
    %v208 = vlaneseq
    %v209 = vshrl.u32 %v208, 7
    %v210 = vsub.s32 3, %v209
    %v211 = vrot.slane %v195, %v210
    %vm212 = vcmp.eq.s32.totalorder %v199, 1
    %vm213 = vcmp.eq.s32.totalorder %v203, 1
    %vm214 = vcmp.eq.s32.totalorder %v207, 1
    %vm215 = vcmp.eq.s32.totalorder %v211, 1
    %221 = vrot.lane.b32.xlu0 %v187, 15
    %v222 = vpop.permute.xlu0 %221
    %223 = vrot.lane.b32.xlu0 %v188, 15
    %v224 = vpop.permute.xlu0 %223
    %225 = vrot.lane.b32.xlu0 %v189, 15
    %v226 = vpop.permute.xlu0 %225
    %227 = vrot.lane.b32.xlu0 %v190, 15
    %v228 = vpop.permute.xlu0 %227
    %229 = vrot.lane.b32.xlu0 %v191, 15
    %v230 = vpop.permute.xlu0 %229
    %vm231 = vcmask 121856
    %v232 = vsel %vm231, %v222, %v224
    %v233 = vsel %vm231, %v224, %v226
    %v234 = vsel %vm231, %v226, %v228
    %v235 = vsel %vm231, %v228, %v230
    %v240 = vsel %vm212, %v232, 0.0
    %v241 = vsel %vm213, %v233, 0.0
    %v242 = vsel %vm214, %v234, 0.0
    %v243 = vsel %vm215, %v235, 0.0
    %244 = vst [vmem:[#allocation3 + $0x40] sm:$0xff] %v240
    %245 = vst [vmem:[#allocation3 + $0x48] sm:$0xff] %v241
    %246 = vst [vmem:[#allocation3 + $0x50] sm:$0xff] %v242
    %247 = vst [vmem:[#allocation3 + $0x58] sm:$0xff] %v243
    %v248 = vld [vmem:[#allocation2] sm:$0xff]
    %v249 = vld [vmem:[#allocation2 + $0x8] sm:$0xff]
    %v250 = vld [vmem:[#allocation2 + $0x10] sm:$0xff]
    %v251 = vld [vmem:[#allocation2 + $0x18] sm:$0xff]
    %v252 = vld [vmem:[#allocation2 + $0x20] sm:$0xff]
    %s253 = scalar_lea.vmem [#allocation7], 3
    %v254 = vld [vmem:[%s253] ss:$8 sm:$0xf]
    %vm255 = vcmp.gt.f32.partialorder %v254, 0.5
    %v256 = vsel %vm255, 1, 0
    %v257 = vlaneseq
    %v258 = vshrl.u32 %v257, 7
    %v259 = vsub.s32 0, %v258
    %v260 = vrot.slane %v256, %v259
    %v261 = vlaneseq
    %v262 = vshrl.u32 %v261, 7
    %v263 = vsub.s32 1, %v262
    %v264 = vrot.slane %v256, %v263
    %v265 = vlaneseq
    %v266 = vshrl.u32 %v265, 7
    %v267 = vsub.s32 2, %v266
    %v268 = vrot.slane %v256, %v267
    %v269 = vlaneseq
    %v270 = vshrl.u32 %v269, 7
    %v271 = vsub.s32 3, %v270
    %v272 = vrot.slane %v256, %v271
    %vm273 = vcmp.eq.s32.totalorder %v260, 1
    %vm274 = vcmp.eq.s32.totalorder %v264, 1
    %vm275 = vcmp.eq.s32.totalorder %v268, 1
    %vm276 = vcmp.eq.s32.totalorder %v272, 1
    %282 = vrot.lane.b32.xlu0 %v248, 1
    %v283 = vpop.permute.xlu0 %282
    %284 = vrot.lane.b32.xlu0 %v249, 1
    %v285 = vpop.permute.xlu0 %284
    %286 = vrot.lane.b32.xlu0 %v250, 1
    %v287 = vpop.permute.xlu0 %286
    %288 = vrot.lane.b32.xlu0 %v251, 1
    %v289 = vpop.permute.xlu0 %288
    %290 = vrot.lane.b32.xlu0 %v252, 1
    %v291 = vpop.permute.xlu0 %290
    %vm292 = vcmask 7168
    %v293 = vsel %vm292, %v283, %v285
    %v294 = vsel %vm292, %v285, %v287
    %v295 = vsel %vm292, %v287, %v289
    %v296 = vsel %vm292, %v289, %v291
    %v301 = vsel %vm273, %v293, 0.0
    %v302 = vsel %vm274, %v294, 0.0
    %v303 = vsel %vm275, %v295, 0.0
    %v304 = vsel %vm276, %v296, 0.0
    %305 = vst [vmem:[#allocation3 + $0x60] sm:$0xff] %v301
    %306 = vst [vmem:[#allocation3 + $0x68] sm:$0xff] %v302
    %307 = vst [vmem:[#allocation3 + $0x70] sm:$0xff] %v303
    %308 = vst [vmem:[#allocation3 + $0x78] sm:$0xff] %v304
    %v309 = vld [vmem:[#allocation2 + $0x8] sm:$0xff]
    %v310 = vld [vmem:[#allocation2 + $0x10] sm:$0xff]
    %v311 = vld [vmem:[#allocation2 + $0x18] sm:$0xff]
    %v312 = vld [vmem:[#allocation2 + $0x20] sm:$0xff]
    %313 = vst [vmem:[#allocation3 + $0x80] sm:$0xff] %v309
    %314 = vst [vmem:[#allocation3 + $0x88] sm:$0xff] %v310
    %315 = vst [vmem:[#allocation3 + $0x90] sm:$0xff] %v311
    %316 = vst [vmem:[#allocation3 + $0x98] sm:$0xff] %v312
    %v317 = vld [vmem:[#allocation2 + $0x8] sm:$0xff]
    %v318 = vld [vmem:[#allocation2 + $0x10] sm:$0xff]
    %v319 = vld [vmem:[#allocation2 + $0x18] sm:$0xff]
    %v320 = vld [vmem:[#allocation2 + $0x20] sm:$0xff]
    %v321 = vld [vmem:[#allocation2 + $0x28] sm:$0xff]
    %s322 = scalar_lea.vmem [#allocation7], 5
    %v323 = vld [vmem:[%s322] ss:$8 sm:$0xf]
    %vm324 = vcmp.gt.f32.partialorder %v323, 0.5
    %v325 = vsel %vm324, 1, 0
    %v326 = vlaneseq
    %v327 = vshrl.u32 %v326, 7
    %v328 = vsub.s32 0, %v327
    %v329 = vrot.slane %v325, %v328
    %v330 = vlaneseq
    %v331 = vshrl.u32 %v330, 7
    %v332 = vsub.s32 1, %v331
    %v333 = vrot.slane %v325, %v332
    %v334 = vlaneseq
    %v335 = vshrl.u32 %v334, 7
    %v336 = vsub.s32 2, %v335
    %v337 = vrot.slane %v325, %v336
    %v338 = vlaneseq
    %v339 = vshrl.u32 %v338, 7
    %v340 = vsub.s32 3, %v339
    %v341 = vrot.slane %v325, %v340
    %vm342 = vcmp.eq.s32.totalorder %v329, 1
    %vm343 = vcmp.eq.s32.totalorder %v333, 1
    %vm344 = vcmp.eq.s32.totalorder %v337, 1
    %vm345 = vcmp.eq.s32.totalorder %v341, 1
    %351 = vrot.lane.b32.xlu0 %v317, 127
    %v352 = vpop.permute.xlu0 %351
    %353 = vrot.lane.b32.xlu0 %v318, 127
    %v354 = vpop.permute.xlu0 %353
    %355 = vrot.lane.b32.xlu0 %v319, 127
    %v356 = vpop.permute.xlu0 %355
    %357 = vrot.lane.b32.xlu0 %v320, 127
    %v358 = vpop.permute.xlu0 %357
    %359 = vrot.lane.b32.xlu0 %v321, 127
    %v360 = vpop.permute.xlu0 %359
    %vm361 = vcmask 1039360
    %v362 = vsel %vm361, %v352, %v354
    %v363 = vsel %vm361, %v354, %v356
    %v364 = vsel %vm361, %v356, %v358
    %v365 = vsel %vm361, %v358, %v360
    %v370 = vsel %vm342, %v362, 0.0
    %v371 = vsel %vm343, %v363, 0.0
    %v372 = vsel %vm344, %v364, 0.0
    %v373 = vsel %vm345, %v365, 0.0
    %374 = vst [vmem:[#allocation3 + $0xa0] sm:$0xff] %v370
    %375 = vst [vmem:[#allocation3 + $0xa8] sm:$0xff] %v371
    %376 = vst [vmem:[#allocation3 + $0xb0] sm:$0xff] %v372
    %377 = vst [vmem:[#allocation3 + $0xb8] sm:$0xff] %v373
    %v378 = vld [vmem:[#allocation2 + $0x8] sm:$0xff]
    %v379 = vld [vmem:[#allocation2 + $0x10] sm:$0xff]
    %v380 = vld [vmem:[#allocation2 + $0x18] sm:$0xff]
    %v381 = vld [vmem:[#allocation2 + $0x20] sm:$0xff]
    %v382 = vld [vmem:[#allocation2 + $0x28] sm:$0xff]
    %s383 = scalar_lea.vmem [#allocation7], 6
    %v384 = vld [vmem:[%s383] ss:$8 sm:$0xf]
    %vm385 = vcmp.gt.f32.partialorder %v384, 0.5
    %v386 = vsel %vm385, 1, 0
    %v387 = vlaneseq
    %v388 = vshrl.u32 %v387, 7
    %v389 = vsub.s32 0, %v388
    %v390 = vrot.slane %v386, %v389
    %v391 = vlaneseq
    %v392 = vshrl.u32 %v391, 7
    %v393 = vsub.s32 1, %v392
    %v394 = vrot.slane %v386, %v393
    %v395 = vlaneseq
    %v396 = vshrl.u32 %v395, 7
    %v397 = vsub.s32 2, %v396
    %v398 = vrot.slane %v386, %v397
    %v399 = vlaneseq
    %v400 = vshrl.u32 %v399, 7
    %v401 = vsub.s32 3, %v400
    %v402 = vrot.slane %v386, %v401
    %vm403 = vcmp.eq.s32.totalorder %v390, 1
    %vm404 = vcmp.eq.s32.totalorder %v394, 1
    %vm405 = vcmp.eq.s32.totalorder %v398, 1
    %vm406 = vcmp.eq.s32.totalorder %v402, 1
    %412 = vrot.lane.b32.xlu0 %v378, 113
    %v413 = vpop.permute.xlu0 %412
    %414 = vrot.lane.b32.xlu0 %v379, 113
    %v415 = vpop.permute.xlu0 %414
    %416 = vrot.lane.b32.xlu0 %v380, 113
    %v417 = vpop.permute.xlu0 %416
    %418 = vrot.lane.b32.xlu0 %v381, 113
    %v419 = vpop.permute.xlu0 %418
    %420 = vrot.lane.b32.xlu0 %v382, 113
    %v421 = vpop.permute.xlu0 %420
    %vm422 = vcmask 924672
    %v423 = vsel %vm422, %v413, %v415
    %v424 = vsel %vm422, %v415, %v417
    %v425 = vsel %vm422, %v417, %v419
    %v426 = vsel %vm422, %v419, %v421
    %v431 = vsel %vm403, %v423, 0.0
    %v432 = vsel %vm404, %v424, 0.0
    %v433 = vsel %vm405, %v425, 0.0
    %v434 = vsel %vm406, %v426, 0.0
    %435 = vst [vmem:[#allocation3 + $0xc0] sm:$0xff] %v431
    %436 = vst [vmem:[#allocation3 + $0xc8] sm:$0xff] %v432
    %437 = vst [vmem:[#allocation3 + $0xd0] sm:$0xff] %v433
    %438 = vst [vmem:[#allocation3 + $0xd8] sm:$0xff] %v434
    %v439 = vld [vmem:[#allocation2 + $0x8] sm:$0xff]
    %v440 = vld [vmem:[#allocation2 + $0x10] sm:$0xff]
    %v441 = vld [vmem:[#allocation2 + $0x18] sm:$0xff]
    %v442 = vld [vmem:[#allocation2 + $0x20] sm:$0xff]
    %v443 = vld [vmem:[#allocation2 + $0x28] sm:$0xff]
    %s444 = scalar_lea.vmem [#allocation7], 7
    %v445 = vld [vmem:[%s444] ss:$8 sm:$0xf]
    %vm446 = vcmp.gt.f32.partialorder %v445, 0.5
    %v447 = vsel %vm446, 1, 0
    %v448 = vlaneseq
    %v449 = vshrl.u32 %v448, 7
    %v450 = vsub.s32 0, %v449
    %v451 = vrot.slane %v447, %v450
    %v452 = vlaneseq
    %v453 = vshrl.u32 %v452, 7
    %v454 = vsub.s32 1, %v453
    %v455 = vrot.slane %v447, %v454
    %v456 = vlaneseq
    %v457 = vshrl.u32 %v456, 7
    %v458 = vsub.s32 2, %v457
    %v459 = vrot.slane %v447, %v458
    %v460 = vlaneseq
    %v461 = vshrl.u32 %v460, 7
    %v462 = vsub.s32 3, %v461
    %v463 = vrot.slane %v447, %v462
    %vm464 = vcmp.eq.s32.totalorder %v451, 1
    %vm465 = vcmp.eq.s32.totalorder %v455, 1
    %vm466 = vcmp.eq.s32.totalorder %v459, 1
    %vm467 = vcmp.eq.s32.totalorder %v463, 1
    %473 = vrot.lane.b32.xlu0 %v439, 112
    %v474 = vpop.permute.xlu0 %473
    %475 = vrot.lane.b32.xlu0 %v440, 112
    %v476 = vpop.permute.xlu0 %475
    %477 = vrot.lane.b32.xlu0 %v441, 112
    %v478 = vpop.permute.xlu0 %477
    %479 = vrot.lane.b32.xlu0 %v442, 112
    %v480 = vpop.permute.xlu0 %479
    %481 = vrot.lane.b32.xlu0 %v443, 112
    %v482 = vpop.permute.xlu0 %481
    %vm483 = vcmask 916480
    %v484 = vsel %vm483, %v474, %v476
    %v485 = vsel %vm483, %v476, %v478
    %v486 = vsel %vm483, %v478, %v480
    %v487 = vsel %vm483, %v480, %v482
    %v492 = vsel %vm464, %v484, 0.0
    %v493 = vsel %vm465, %v485, 0.0
    %v494 = vsel %vm466, %v486, 0.0
    %v495 = vsel %vm467, %v487, 0.0
    %496 = vst [vmem:[#allocation3 + $0xe0] sm:$0xff] %v492
    %497 = vst [vmem:[#allocation3 + $0xe8] sm:$0xff] %v493
    %498 = vst [vmem:[#allocation3 + $0xf0] sm:$0xff] %v494
    %499 = vst [vmem:[#allocation3 + $0xf8] sm:$0xff] %v495
    %v500 = vld [vmem:[#allocation2 + $0x8] sm:$0xff]
    %v501 = vld [vmem:[#allocation2 + $0x10] sm:$0xff]
    %v502 = vld [vmem:[#allocation2 + $0x18] sm:$0xff]
    %v503 = vld [vmem:[#allocation2 + $0x20] sm:$0xff]
    %v504 = vld [vmem:[#allocation2 + $0x28] sm:$0xff]
    %s505 = scalar_lea.vmem [#allocation7], 32
    %v506 = vld [vmem:[%s505] ss:$8 sm:$0xf]
    %vm507 = vcmp.gt.f32.partialorder %v506, 0.5
    %v508 = vsel %vm507, 1, 0
    %v509 = vlaneseq
    %v510 = vshrl.u32 %v509, 7
    %v511 = vsub.s32 0, %v510
    %v512 = vrot.slane %v508, %v511
    %v513 = vlaneseq
    %v514 = vshrl.u32 %v513, 7
    %v515 = vsub.s32 1, %v514
    %v516 = vrot.slane %v508, %v515
    %v517 = vlaneseq
    %v518 = vshrl.u32 %v517, 7
    %v519 = vsub.s32 2, %v518
    %v520 = vrot.slane %v508, %v519
    %v521 = vlaneseq
    %v522 = vshrl.u32 %v521, 7
    %v523 = vsub.s32 3, %v522
    %v524 = vrot.slane %v508, %v523
    %vm525 = vcmp.eq.s32.totalorder %v512, 1
    %vm526 = vcmp.eq.s32.totalorder %v516, 1
    %vm527 = vcmp.eq.s32.totalorder %v520, 1
    %vm528 = vcmp.eq.s32.totalorder %v524, 1
    %534 = vrot.lane.b32.xlu0 %v500, 111
    %v535 = vpop.permute.xlu0 %534
    %536 = vrot.lane.b32.xlu0 %v501, 111
    %v537 = vpop.permute.xlu0 %536
    %538 = vrot.lane.b32.xlu0 %v502, 111
    %v539 = vpop.permute.xlu0 %538
    %540 = vrot.lane.b32.xlu0 %v503, 111
    %v541 = vpop.permute.xlu0 %540
    %542 = vrot.lane.b32.xlu0 %v504, 111
    %v543 = vpop.permute.xlu0 %542
    %vm544 = vcmask 908288
    %v545 = vsel %vm544, %v535, %v537
    %v546 = vsel %vm544, %v537, %v539
    %v547 = vsel %vm544, %v539, %v541
    %v548 = vsel %vm544, %v541, %v543
    %v553 = vsel %vm525, %v545, 0.0
    %v554 = vsel %vm526, %v546, 0.0
    %v555 = vsel %vm527, %v547, 0.0
    %v556 = vsel %vm528, %v548, 0.0
    %557 = vst [vmem:[#allocation3 + $0x100] sm:$0xff] %v553
    %558 = vst [vmem:[#allocation3 + $0x108] sm:$0xff] %v554
    %559 = vst [vmem:[#allocation3 + $0x110] sm:$0xff] %v555
    %560 = vst [vmem:[#allocation3 + $0x118] sm:$0xff] %v556
    %v561 = vld [vmem:[%s2] sm:$0xff]
    %v562 = vld [vmem:[#allocation3] sm:$0xff]
    %v563 = vld [vmem:[#allocation3 + $0x8] sm:$0xff]
    %v564 = vld [vmem:[#allocation3 + $0x10] sm:$0xff]
    %v565 = vld [vmem:[#allocation3 + $0x18] sm:$0xff]
    %v566 = vld [vmem:[#allocation3 + $0x20] sm:$0xff]
    %v567 = vld [vmem:[#allocation3 + $0x28] sm:$0xff]
    %v568 = vld [vmem:[#allocation3 + $0x30] sm:$0xff]
    %v569 = vld [vmem:[#allocation3 + $0x38] sm:$0xff]
    %v570 = vld [vmem:[#allocation3 + $0x40] sm:$0xff]
    %v571 = vld [vmem:[#allocation3 + $0x48] sm:$0xff]
    %v572 = vld [vmem:[#allocation3 + $0x50] sm:$0xff]
    %v573 = vld [vmem:[#allocation3 + $0x58] sm:$0xff]
    %v574 = vld [vmem:[#allocation3 + $0x60] sm:$0xff]
    %v575 = vld [vmem:[#allocation3 + $0x68] sm:$0xff]
    %v576 = vld [vmem:[#allocation3 + $0x70] sm:$0xff]
    %v577 = vld [vmem:[#allocation3 + $0x78] sm:$0xff]
    %v578 = vld [vmem:[#allocation3 + $0x80] sm:$0xff]
    %v579 = vld [vmem:[#allocation3 + $0x88] sm:$0xff]
    %v580 = vld [vmem:[#allocation3 + $0x90] sm:$0xff]
    %v581 = vld [vmem:[#allocation3 + $0x98] sm:$0xff]
    %v582 = vld [vmem:[#allocation3 + $0xa0] sm:$0xff]
    %v583 = vld [vmem:[#allocation3 + $0xa8] sm:$0xff]
    %v584 = vld [vmem:[#allocation3 + $0xb0] sm:$0xff]
    %v585 = vld [vmem:[#allocation3 + $0xb8] sm:$0xff]
    %v586 = vld [vmem:[#allocation3 + $0xc0] sm:$0xff]
    %v587 = vld [vmem:[#allocation3 + $0xc8] sm:$0xff]
    %v588 = vld [vmem:[#allocation3 + $0xd0] sm:$0xff]
    %v589 = vld [vmem:[#allocation3 + $0xd8] sm:$0xff]
    %v590 = vld [vmem:[#allocation3 + $0xe0] sm:$0xff]
    %v591 = vld [vmem:[#allocation3 + $0xe8] sm:$0xff]
    %v592 = vld [vmem:[#allocation3 + $0xf0] sm:$0xff]
    %v593 = vld [vmem:[#allocation3 + $0xf8] sm:$0xff]
    %v594 = vld [vmem:[#allocation3 + $0x100] sm:$0xff]
    %v595 = vld [vmem:[#allocation3 + $0x108] sm:$0xff]
    %v596 = vld [vmem:[#allocation3 + $0x110] sm:$0xff]
    %v597 = vld [vmem:[#allocation3 + $0x118] sm:$0xff]
    %vm598 = vcmask 588800
    %v600 = vsel %vm598, %v561, 0
    %v602 = vand.u32 %v563, 4294901760
    %603 = vmatprep.subr.mxu0 %v602
    %v604 = vand.u32 %v562, 4294901760
    %605 = vmatpush1.msra.mxu0 %v604
    %v606 = vand.u32 %v567, 4294901760
    %607 = vmatprep.subr.mxu0 %v606
    %v608 = vand.u32 %v566, 4294901760
    %609 = vmatpush1.msra.mxu0 %v608
    %v610 = vand.u32 %v571, 4294901760
    %611 = vmatprep.subr.mxu0 %v610
    %v612 = vand.u32 %v570, 4294901760
    %613 = vmatpush1.msra.mxu0 %v612
    %v614 = vand.u32 %v575, 4294901760
    %615 = vmatprep.subr.mxu0 %v614
    %v616 = vand.u32 %v574, 4294901760
    %617 = vmatpush1.msra.mxu0 %v616
    %v618 = vand.u32 %v579, 4294901760
    %619 = vmatprep.subr.mxu0 %v618
    %v620 = vand.u32 %v578, 4294901760
    %621 = vmatpush1.msra.mxu0 %v620
    %v622 = vand.u32 %v583, 4294901760
    %623 = vmatprep.subr.mxu0 %v622
    %v624 = vand.u32 %v582, 4294901760
    %625 = vmatpush1.msra.mxu0 %v624
    %v626 = vand.u32 %v587, 4294901760
    %627 = vmatprep.subr.mxu0 %v626
    %v628 = vand.u32 %v586, 4294901760
    %629 = vmatpush1.msra.mxu0 %v628
    %v630 = vand.u32 %v591, 4294901760
    %631 = vmatprep.subr.mxu0 %v630
    %v632 = vand.u32 %v590, 4294901760
    %633 = vmatpush1.msra.mxu0 %v632
    %v634 = vand.u32 %v595, 4294901760
    %635 = vmatprep.subr.mxu0 %v634
    %v636 = vand.u32 %v594, 4294901760
    %637 = vmatpush1.msra.mxu0 %v636
    %638 = vmatprep.subr.mxu0 0.0
    %639 = vmatpush1.msra.mxu0 0.0
    %640 = vmatprep.subr.mxu0 0.0
    %641 = vmatpush1.msra.mxu0 0.0
    %642 = vmatprep.subr.mxu0 0.0
    %643 = vmatpush1.msra.mxu0 0.0
    %644 = vmatprep.subr.mxu0 0.0
    %645 = vmatpush1.msra.mxu0 0.0
    %646 = vmatprep.subr.mxu0 0.0
    %647 = vmatpush1.msra.mxu0 0.0
    %648 = vmatprep.subr.mxu0 0.0
    %649 = vmatpush1.msra.mxu0 0.0
    %650 = vmatprep.subr.mxu0 0.0
    %651 = vmatpush1.msra.mxu0 0.0
    %652 = vmatprep.subr.mxu0 0.0
    %653 = vmatpush1.msra.mxu0 0.0
    %654 = vmatprep.subr.mxu0 0.0
    %655 = vmatpush1.msra.mxu0 0.0
    %656 = vmatprep.subr.mxu0 0.0
    %657 = vmatpush1.msra.mxu0 0.0
    %658 = vmatprep.subr.mxu0 0.0
    %659 = vmatpush1.msra.mxu0 0.0
    %660 = vmatprep.subr.mxu0 0.0
    %661 = vmatpush1.msra.mxu0 0.0
    %662 = vmatprep.subr.mxu0 0.0
    %663 = vmatpush1.msra.mxu0 0.0
    %664 = vmatprep.subr.mxu0 0.0
    %665 = vmatpush1.msra.mxu0 0.0
    %666 = vmatprep.subr.mxu0 0.0
    %667 = vmatpush1.msra.mxu0 0.0
    %668 = vmatprep.subr.mxu0 0.0
    %669 = vmatpush1.msra.mxu0 0.0
    %670 = vmatprep.subr.mxu0 0.0
    %671 = vmatpush1.msra.mxu0 0.0
    %672 = vmatprep.subr.mxu0 0.0
    %673 = vmatpush1.msra.mxu0 0.0
    %674 = vmatprep.subr.mxu0 0.0
    %675 = vmatpush1.msra.mxu0 0.0
    %676 = vmatprep.subr.mxu0 0.0
    %677 = vmatpush1.msra.mxu0 0.0
    %678 = vmatprep.subr.mxu0 0.0
    %679 = vmatpush1.msra.mxu0 0.0
    %680 = vmatprep.subr.mxu0 0.0
    %681 = vmatpush1.msra.mxu0 0.0
    %682 = vmatprep.subr.mxu0 0.0
    %683 = vmatpush1.msra.mxu0 0.0
    %684 = vmatprep.mubr.f32.mxu0 0.0
    %v685 = vand.u32 %v600, 4294901760
    %v686 = vsub.f32 %v600, %v685
    %v687 = vand.u32 %v686, 4294901760
    %v688 = vsub.f32 %v686, %v687
    %v689 = vand.u32 %v688, 4294901760
    %690 = vmatmul.mubr.f32.gmra.mrb[0].mxu0 %v689
    %v691 = vpop.f32.mrb[0].mxu0
    %v692 = vadd.f32 0.0, %v691
    %v693 = vpop.f32.mrb[0].mxu0
    %v694 = vadd.f32 0.0, %v693
    %695 = vdwg.mxu0
    %v696 = vand.u32 %v563, 4294901760
    %v697 = vsub.f32 %v563, %v696
    %v698 = vand.u32 %v697, 4294901760
    %v699 = vsub.f32 %v697, %v698
    %v700 = vand.u32 %v699, 4294901760
    %701 = vmatprep.subr.mxu0 %v700
    %v702 = vand.u32 %v562, 4294901760
    %v703 = vsub.f32 %v562, %v702
    %v704 = vand.u32 %v703, 4294901760
    %v705 = vsub.f32 %v703, %v704
    %v706 = vand.u32 %v705, 4294901760
    %707 = vmatpush1.msra.mxu0 %v706
    %v708 = vand.u32 %v567, 4294901760
    %v709 = vsub.f32 %v567, %v708
    %v710 = vand.u32 %v709, 4294901760
    %v711 = vsub.f32 %v709, %v710
    %v712 = vand.u32 %v711, 4294901760
    %713 = vmatprep.subr.mxu0 %v712
    %v714 = vand.u32 %v566, 4294901760
    %v715 = vsub.f32 %v566, %v714
    %v716 = vand.u32 %v715, 4294901760
    %v717 = vsub.f32 %v715, %v716
    %v718 = vand.u32 %v717, 4294901760
    %719 = vmatpush1.msra.mxu0 %v718
    %v720 = vand.u32 %v571, 4294901760
    %v721 = vsub.f32 %v571, %v720
    %v722 = vand.u32 %v721, 4294901760
    %v723 = vsub.f32 %v721, %v722
    %v724 = vand.u32 %v723, 4294901760
    %725 = vmatprep.subr.mxu0 %v724
    %v726 = vand.u32 %v570, 4294901760
    %v727 = vsub.f32 %v570, %v726
    %v728 = vand.u32 %v727, 4294901760
    %v729 = vsub.f32 %v727, %v728
    %v730 = vand.u32 %v729, 4294901760
    %731 = vmatpush1.msra.mxu0 %v730
    %v732 = vand.u32 %v575, 4294901760
    %v733 = vsub.f32 %v575, %v732
    %v734 = vand.u32 %v733, 4294901760
    %v735 = vsub.f32 %v733, %v734
    %v736 = vand.u32 %v735, 4294901760
    %737 = vmatprep.subr.mxu0 %v736
    %v738 = vand.u32 %v574, 4294901760
    %v739 = vsub.f32 %v574, %v738
    %v740 = vand.u32 %v739, 4294901760
    %v741 = vsub.f32 %v739, %v740
    %v742 = vand.u32 %v741, 4294901760
    %743 = vmatpush1.msra.mxu0 %v742
    %v744 = vand.u32 %v579, 4294901760
    %v745 = vsub.f32 %v579, %v744
    %v746 = vand.u32 %v745, 4294901760
    %v747 = vsub.f32 %v745, %v746
    %v748 = vand.u32 %v747, 4294901760
    %749 = vmatprep.subr.mxu0 %v748
    %v750 = vand.u32 %v578, 4294901760
    %v751 = vsub.f32 %v578, %v750
    %v752 = vand.u32 %v751, 4294901760
    %v753 = vsub.f32 %v751, %v752
    %v754 = vand.u32 %v753, 4294901760
    %755 = vmatpush1.msra.mxu0 %v754
    %v756 = vand.u32 %v583, 4294901760
    %v757 = vsub.f32 %v583, %v756
    %v758 = vand.u32 %v757, 4294901760
    %v759 = vsub.f32 %v757, %v758
    %v760 = vand.u32 %v759, 4294901760
    %761 = vmatprep.subr.mxu0 %v760
    %v762 = vand.u32 %v582, 4294901760
    %v763 = vsub.f32 %v582, %v762
    %v764 = vand.u32 %v763, 4294901760
    %v765 = vsub.f32 %v763, %v764
    %v766 = vand.u32 %v765, 4294901760
    %767 = vmatpush1.msra.mxu0 %v766
    %v768 = vand.u32 %v587, 4294901760
    %v769 = vsub.f32 %v587, %v768
    %v770 = vand.u32 %v769, 4294901760
    %v771 = vsub.f32 %v769, %v770
    %v772 = vand.u32 %v771, 4294901760
    %773 = vmatprep.subr.mxu0 %v772
    %v774 = vand.u32 %v586, 4294901760
    %v775 = vsub.f32 %v586, %v774
    %v776 = vand.u32 %v775, 4294901760
    %v777 = vsub.f32 %v775, %v776
    %v778 = vand.u32 %v777, 4294901760
    %779 = vmatpush1.msra.mxu0 %v778
    %v780 = vand.u32 %v591, 4294901760
    %v781 = vsub.f32 %v591, %v780
    %v782 = vand.u32 %v781, 4294901760
    %v783 = vsub.f32 %v781, %v782
    %v784 = vand.u32 %v783, 4294901760
    %785 = vmatprep.subr.mxu0 %v784
    %v786 = vand.u32 %v590, 4294901760
    %v787 = vsub.f32 %v590, %v786
    %v788 = vand.u32 %v787, 4294901760
    %v789 = vsub.f32 %v787, %v788
    %v790 = vand.u32 %v789, 4294901760
    %791 = vmatpush1.msra.mxu0 %v790
    %v792 = vand.u32 %v595, 4294901760
    %v793 = vsub.f32 %v595, %v792
    %v794 = vand.u32 %v793, 4294901760
    %v795 = vsub.f32 %v793, %v794
    %v796 = vand.u32 %v795, 4294901760
    %797 = vmatprep.subr.mxu0 %v796
    %v798 = vand.u32 %v594, 4294901760
    %v799 = vsub.f32 %v594, %v798
    %v800 = vand.u32 %v799, 4294901760
    %v801 = vsub.f32 %v799, %v800
    %v802 = vand.u32 %v801, 4294901760
    %803 = vmatpush1.msra.mxu0 %v802
    %804 = vmatprep.subr.mxu0 0.0
    %805 = vmatpush1.msra.mxu0 0.0
    %806 = vmatprep.subr.mxu0 0.0
    %807 = vmatpush1.msra.mxu0 0.0
    %808 = vmatprep.subr.mxu0 0.0
    %809 = vmatpush1.msra.mxu0 0.0
    %810 = vmatprep.subr.mxu0 0.0
    %811 = vmatpush1.msra.mxu0 0.0
    %812 = vmatprep.subr.mxu0 0.0
    %813 = vmatpush1.msra.mxu0 0.0
    %814 = vmatprep.subr.mxu0 0.0
    %815 = vmatpush1.msra.mxu0 0.0
    %816 = vmatprep.subr.mxu0 0.0
    %817 = vmatpush1.msra.mxu0 0.0
    %818 = vmatprep.subr.mxu0 0.0
    %819 = vmatpush1.msra.mxu0 0.0
    %820 = vmatprep.subr.mxu0 0.0
    %821 = vmatpush1.msra.mxu0 0.0
    %822 = vmatprep.subr.mxu0 0.0
    %823 = vmatpush1.msra.mxu0 0.0
    %824 = vmatprep.subr.mxu0 0.0
    %825 = vmatpush1.msra.mxu0 0.0
    %826 = vmatprep.subr.mxu0 0.0
    %827 = vmatpush1.msra.mxu0 0.0
    %828 = vmatprep.subr.mxu0 0.0
    %829 = vmatpush1.msra.mxu0 0.0
    %830 = vmatprep.subr.mxu0 0.0
    %831 = vmatpush1.msra.mxu0 0.0
    %832 = vmatprep.subr.mxu0 0.0
    %833 = vmatpush1.msra.mxu0 0.0
    %834 = vmatprep.subr.mxu0 0.0
    %835 = vmatpush1.msra.mxu0 0.0
    %836 = vmatprep.subr.mxu0 0.0
    %837 = vmatpush1.msra.mxu0 0.0
    %838 = vmatprep.subr.mxu0 0.0
    %839 = vmatpush1.msra.mxu0 0.0
    %840 = vmatprep.subr.mxu0 0.0
    %841 = vmatpush1.msra.mxu0 0.0
    %842 = vmatprep.subr.mxu0 0.0
    %843 = vmatpush1.msra.mxu0 0.0
    %844 = vmatprep.subr.mxu0 0.0
    %845 = vmatpush1.msra.mxu0 0.0
    %846 = vmatprep.subr.mxu0 0.0
    %847 = vmatpush1.msra.mxu0 0.0
    %848 = vmatprep.subr.mxu0 0.0
    %849 = vmatpush1.msra.mxu0 0.0
    %850 = vmatprep.mubr.f32.mxu0 0.0
    %v851 = vand.u32 %v600, 4294901760
    %852 = vmatmul.mubr.f32.gmra.mrb[0].mxu0 %v851
    %v853 = vpop.f32.mrb[0].mxu0
    %v854 = vadd.f32 %v692, %v853
    %v855 = vpop.f32.mrb[0].mxu0
    %v856 = vadd.f32 %v694, %v855
    %857 = vdwg.mxu0
    %v858 = vand.u32 %v563, 4294901760
    %v859 = vsub.f32 %v563, %v858
    %860 = vmatprep.subr.mxu0 %v859
    %v861 = vand.u32 %v562, 4294901760
    %v862 = vsub.f32 %v562, %v861
    %863 = vmatpush1.msra.mxu0 %v862
    %v864 = vand.u32 %v567, 4294901760
    %v865 = vsub.f32 %v567, %v864
    %866 = vmatprep.subr.mxu0 %v865
    %v867 = vand.u32 %v566, 4294901760
    %v868 = vsub.f32 %v566, %v867
    %869 = vmatpush1.msra.mxu0 %v868
    %v870 = vand.u32 %v571, 4294901760
    %v871 = vsub.f32 %v571, %v870
    %872 = vmatprep.subr.mxu0 %v871
    %v873 = vand.u32 %v570, 4294901760
    %v874 = vsub.f32 %v570, %v873
    %875 = vmatpush1.msra.mxu0 %v874
    %v876 = vand.u32 %v575, 4294901760
    %v877 = vsub.f32 %v575, %v876
    %878 = vmatprep.subr.mxu0 %v877
    %v879 = vand.u32 %v574, 4294901760
    %v880 = vsub.f32 %v574, %v879
    %881 = vmatpush1.msra.mxu0 %v880
    %v882 = vand.u32 %v579, 4294901760
    %v883 = vsub.f32 %v579, %v882
    %884 = vmatprep.subr.mxu0 %v883
    %v885 = vand.u32 %v578, 4294901760
    %v886 = vsub.f32 %v578, %v885
    %887 = vmatpush1.msra.mxu0 %v886
    %v888 = vand.u32 %v583, 4294901760
    %v889 = vsub.f32 %v583, %v888
    %890 = vmatprep.subr.mxu0 %v889
    %v891 = vand.u32 %v582, 4294901760
    %v892 = vsub.f32 %v582, %v891
    %893 = vmatpush1.msra.mxu0 %v892
    %v894 = vand.u32 %v587, 4294901760
    %v895 = vsub.f32 %v587, %v894
    %896 = vmatprep.subr.mxu0 %v895
    %v897 = vand.u32 %v586, 4294901760
    %v898 = vsub.f32 %v586, %v897
    %899 = vmatpush1.msra.mxu0 %v898
    %v900 = vand.u32 %v591, 4294901760
    %v901 = vsub.f32 %v591, %v900
    %902 = vmatprep.subr.mxu0 %v901
    %v903 = vand.u32 %v590, 4294901760
    %v904 = vsub.f32 %v590, %v903
    %905 = vmatpush1.msra.mxu0 %v904
    %v906 = vand.u32 %v595, 4294901760
    %v907 = vsub.f32 %v595, %v906
    %908 = vmatprep.subr.mxu0 %v907
    %v909 = vand.u32 %v594, 4294901760
    %v910 = vsub.f32 %v594, %v909
    %911 = vmatpush1.msra.mxu0 %v910
    %912 = vmatprep.subr.mxu0 0.0
    %913 = vmatpush1.msra.mxu0 0.0
    %914 = vmatprep.subr.mxu0 0.0
    %915 = vmatpush1.msra.mxu0 0.0
    %916 = vmatprep.subr.mxu0 0.0
    %917 = vmatpush1.msra.mxu0 0.0
    %918 = vmatprep.subr.mxu0 0.0
    %919 = vmatpush1.msra.mxu0 0.0
    %920 = vmatprep.subr.mxu0 0.0
    %921 = vmatpush1.msra.mxu0 0.0
    %922 = vmatprep.subr.mxu0 0.0
    %923 = vmatpush1.msra.mxu0 0.0
    %924 = vmatprep.subr.mxu0 0.0
    %925 = vmatpush1.msra.mxu0 0.0
    %926 = vmatprep.subr.mxu0 0.0
    %927 = vmatpush1.msra.mxu0 0.0
    %928 = vmatprep.subr.mxu0 0.0
    %929 = vmatpush1.msra.mxu0 0.0
    %930 = vmatprep.subr.mxu0 0.0
    %931 = vmatpush1.msra.mxu0 0.0
    %932 = vmatprep.subr.mxu0 0.0
    %933 = vmatpush1.msra.mxu0 0.0
    %934 = vmatprep.subr.mxu0 0.0
    %935 = vmatpush1.msra.mxu0 0.0
    %936 = vmatprep.subr.mxu0 0.0
    %937 = vmatpush1.msra.mxu0 0.0
    %938 = vmatprep.subr.mxu0 0.0
    %939 = vmatpush1.msra.mxu0 0.0
    %940 = vmatprep.subr.mxu0 0.0
    %941 = vmatpush1.msra.mxu0 0.0
    %942 = vmatprep.subr.mxu0 0.0
    %943 = vmatpush1.msra.mxu0 0.0
    %944 = vmatprep.subr.mxu0 0.0
    %945 = vmatpush1.msra.mxu0 0.0
    %946 = vmatprep.subr.mxu0 0.0
    %947 = vmatpush1.msra.mxu0 0.0
    %948 = vmatprep.subr.mxu0 0.0
    %949 = vmatpush1.msra.mxu0 0.0
    %950 = vmatprep.subr.mxu0 0.0
    %951 = vmatpush1.msra.mxu0 0.0
    %952 = vmatprep.subr.mxu0 0.0
    %953 = vmatpush1.msra.mxu0 0.0
    %954 = vmatprep.subr.mxu0 0.0
    %955 = vmatpush1.msra.mxu0 0.0
    %956 = vmatprep.subr.mxu0 0.0
    %957 = vmatpush1.msra.mxu0 0.0
    %958 = vmatprep.mubr.f32.mxu0 0.0
    %v959 = vand.u32 %v600, 4294901760
    %v960 = vsub.f32 %v600, %v959
    %961 = vmatmul.mubr.f32.gmra.mrb[0].mxu0 %v960
    %v962 = vpop.f32.mrb[0].mxu0
    %v963 = vadd.f32 %v854, %v962
    %v964 = vpop.f32.mrb[0].mxu0
    %v965 = vadd.f32 %v856, %v964
    %966 = vdwg.mxu0
    %v967 = vand.u32 %v563, 4294901760
    %968 = vmatprep.subr.mxu0 %v967
    %v969 = vand.u32 %v562, 4294901760
    %970 = vmatpush1.msra.mxu0 %v969
    %v971 = vand.u32 %v567, 4294901760
    %972 = vmatprep.subr.mxu0 %v971
    %v973 = vand.u32 %v566, 4294901760
    %974 = vmatpush1.msra.mxu0 %v973
    %v975 = vand.u32 %v571, 4294901760
    %976 = vmatprep.subr.mxu0 %v975
    %v977 = vand.u32 %v570, 4294901760
    %978 = vmatpush1.msra.mxu0 %v977
    %v979 = vand.u32 %v575, 4294901760
    %980 = vmatprep.subr.mxu0 %v979
    %v981 = vand.u32 %v574, 4294901760
    %982 = vmatpush1.msra.mxu0 %v981
    %v983 = vand.u32 %v579, 4294901760
    %984 = vmatprep.subr.mxu0 %v983
    %v985 = vand.u32 %v578, 4294901760
    %986 = vmatpush1.msra.mxu0 %v985
    %v987 = vand.u32 %v583, 4294901760
    %988 = vmatprep.subr.mxu0 %v987
    %v989 = vand.u32 %v582, 4294901760
    %990 = vmatpush1.msra.mxu0 %v989
    %v991 = vand.u32 %v587, 4294901760
    %992 = vmatprep.subr.mxu0 %v991
    %v993 = vand.u32 %v586, 4294901760
    %994 = vmatpush1.msra.mxu0 %v993
    %v995 = vand.u32 %v591, 4294901760
    %996 = vmatprep.subr.mxu0 %v995
    %v997 = vand.u32 %v590, 4294901760
    %998 = vmatpush1.msra.mxu0 %v997
    %v999 = vand.u32 %v595, 4294901760
    %1000 = vmatprep.subr.mxu0 %v999
    %v1001 = vand.u32 %v594, 4294901760
    %1002 = vmatpush1.msra.mxu0 %v1001
    %1003 = vmatprep.subr.mxu0 0.0
    %1004 = vmatpush1.msra.mxu0 0.0
    %1005 = vmatprep.subr.mxu0 0.0
    %1006 = vmatpush1.msra.mxu0 0.0
    %1007 = vmatprep.subr.mxu0 0.0
    %1008 = vmatpush1.msra.mxu0 0.0
    %1009 = vmatprep.subr.mxu0 0.0
    %1010 = vmatpush1.msra.mxu0 0.0
    %1011 = vmatprep.subr.mxu0 0.0
    %1012 = vmatpush1.msra.mxu0 0.0
    %1013 = vmatprep.subr.mxu0 0.0
    %1014 = vmatpush1.msra.mxu0 0.0
    %1015 = vmatprep.subr.mxu0 0.0
    %1016 = vmatpush1.msra.mxu0 0.0
    %1017 = vmatprep.subr.mxu0 0.0
    %1018 = vmatpush1.msra.mxu0 0.0
    %1019 = vmatprep.subr.mxu0 0.0
    %1020 = vmatpush1.msra.mxu0 0.0
    %1021 = vmatprep.subr.mxu0 0.0
    %1022 = vmatpush1.msra.mxu0 0.0
    %1023 = vmatprep.subr.mxu0 0.0
    %1024 = vmatpush1.msra.mxu0 0.0
    %1025 = vmatprep.subr.mxu0 0.0
    %1026 = vmatpush1.msra.mxu0 0.0
    %1027 = vmatprep.subr.mxu0 0.0
    %1028 = vmatpush1.msra.mxu0 0.0
    %1029 = vmatprep.subr.mxu0 0.0
    %1030 = vmatpush1.msra.mxu0 0.0
    %1031 = vmatprep.subr.mxu0 0.0
    %1032 = vmatpush1.msra.mxu0 0.0
    %1033 = vmatprep.subr.mxu0 0.0
    %1034 = vmatpush1.msra.mxu0 0.0
    %1035 = vmatprep.subr.mxu0 0.0
    %1036 = vmatpush1.msra.mxu0 0.0
    %1037 = vmatprep.subr.mxu0 0.0
    %1038 = vmatpush1.msra.mxu0 0.0
    %1039 = vmatprep.subr.mxu0 0.0
    %1040 = vmatpush1.msra.mxu0 0.0
    %1041 = vmatprep.subr.mxu0 0.0
    %1042 = vmatpush1.msra.mxu0 0.0
    %1043 = vmatprep.subr.mxu0 0.0
    %1044 = vmatpush1.msra.mxu0 0.0
    %1045 = vmatprep.subr.mxu0 0.0
    %1046 = vmatpush1.msra.mxu0 0.0
    %1047 = vmatprep.subr.mxu0 0.0
    %1048 = vmatpush1.msra.mxu0 0.0
    %1049 = vmatprep.mubr.f32.mxu0 0.0
    %v1050 = vand.u32 %v600, 4294901760
    %v1051 = vsub.f32 %v600, %v1050
    %v1052 = vand.u32 %v1051, 4294901760
    %1053 = vmatmul.mubr.f32.gmra.mrb[0].mxu0 %v1052
    %v1054 = vpop.f32.mrb[0].mxu0
    %v1055 = vadd.f32 %v963, %v1054
    %v1056 = vpop.f32.mrb[0].mxu0
    %v1057 = vadd.f32 %v965, %v1056
    %1058 = vdwg.mxu0
    %v1059 = vand.u32 %v563, 4294901760
    %v1060 = vsub.f32 %v563, %v1059
    %v1061 = vand.u32 %v1060, 4294901760
    %1062 = vmatprep.subr.mxu0 %v1061
    %v1063 = vand.u32 %v562, 4294901760
    %v1064 = vsub.f32 %v562, %v1063
    %v1065 = vand.u32 %v1064, 4294901760
    %1066 = vmatpush1.msra.mxu0 %v1065
    %v1067 = vand.u32 %v567, 4294901760
    %v1068 = vsub.f32 %v567, %v1067
    %v1069 = vand.u32 %v1068, 4294901760
    %1070 = vmatprep.subr.mxu0 %v1069
    %v1071 = vand.u32 %v566, 4294901760
    %v1072 = vsub.f32 %v566, %v1071
    %v1073 = vand.u32 %v1072, 4294901760
    %1074 = vmatpush1.msra.mxu0 %v1073
    %v1075 = vand.u32 %v571, 4294901760
    %v1076 = vsub.f32 %v571, %v1075
    %v1077 = vand.u32 %v1076, 4294901760
    %1078 = vmatprep.subr.mxu0 %v1077
    %v1079 = vand.u32 %v570, 4294901760
    %v1080 = vsub.f32 %v570, %v1079
    %v1081 = vand.u32 %v1080, 4294901760
    %1082 = vmatpush1.msra.mxu0 %v1081
    %v1083 = vand.u32 %v575, 4294901760
    %v1084 = vsub.f32 %v575, %v1083
    %v1085 = vand.u32 %v1084, 4294901760
    %1086 = vmatprep.subr.mxu0 %v1085
    %v1087 = vand.u32 %v574, 4294901760
    %v1088 = vsub.f32 %v574, %v1087
    %v1089 = vand.u32 %v1088, 4294901760
    %1090 = vmatpush1.msra.mxu0 %v1089
    %v1091 = vand.u32 %v579, 4294901760
    %v1092 = vsub.f32 %v579, %v1091
    %v1093 = vand.u32 %v1092, 4294901760
    %1094 = vmatprep.subr.mxu0 %v1093
    %v1095 = vand.u32 %v578, 4294901760
    %v1096 = vsub.f32 %v578, %v1095
    %v1097 = vand.u32 %v1096, 4294901760
    %1098 = vmatpush1.msra.mxu0 %v1097
    %v1099 = vand.u32 %v583, 4294901760
    %v1100 = vsub.f32 %v583, %v1099
    %v1101 = vand.u32 %v1100, 4294901760
    %1102 = vmatprep.subr.mxu0 %v1101
    %v1103 = vand.u32 %v582, 4294901760
    %v1104 = vsub.f32 %v582, %v1103
    %v1105 = vand.u32 %v1104, 4294901760
    %1106 = vmatpush1.msra.mxu0 %v1105
    %v1107 = vand.u32 %v587, 4294901760
    %v1108 = vsub.f32 %v587, %v1107
    %v1109 = vand.u32 %v1108, 4294901760
    %1110 = vmatprep.subr.mxu0 %v1109
    %v1111 = vand.u32 %v586, 4294901760
    %v1112 = vsub.f32 %v586, %v1111
    %v1113 = vand.u32 %v1112, 4294901760
    %1114 = vmatpush1.msra.mxu0 %v1113
    %v1115 = vand.u32 %v591, 4294901760
    %v1116 = vsub.f32 %v591, %v1115
    %v1117 = vand.u32 %v1116, 4294901760
    %1118 = vmatprep.subr.mxu0 %v1117
    %v1119 = vand.u32 %v590, 4294901760
    %v1120 = vsub.f32 %v590, %v1119
    %v1121 = vand.u32 %v1120, 4294901760
    %1122 = vmatpush1.msra.mxu0 %v1121
    %v1123 = vand.u32 %v595, 4294901760
    %v1124 = vsub.f32 %v595, %v1123
    %v1125 = vand.u32 %v1124, 4294901760
    %1126 = vmatprep.subr.mxu0 %v1125
    %v1127 = vand.u32 %v594, 4294901760
    %v1128 = vsub.f32 %v594, %v1127
    %v1129 = vand.u32 %v1128, 4294901760
    %1130 = vmatpush1.msra.mxu0 %v1129
    %1131 = vmatprep.subr.mxu0 0.0
    %1132 = vmatpush1.msra.mxu0 0.0
    %1133 = vmatprep.subr.mxu0 0.0
    %1134 = vmatpush1.msra.mxu0 0.0
    %1135 = vmatprep.subr.mxu0 0.0
    %1136 = vmatpush1.msra.mxu0 0.0
    %1137 = vmatprep.subr.mxu0 0.0
    %1138 = vmatpush1.msra.mxu0 0.0
    %1139 = vmatprep.subr.mxu0 0.0
    %1140 = vmatpush1.msra.mxu0 0.0
    %1141 = vmatprep.subr.mxu0 0.0
    %1142 = vmatpush1.msra.mxu0 0.0
    %1143 = vmatprep.subr.mxu0 0.0
    %1144 = vmatpush1.msra.mxu0 0.0
    %1145 = vmatprep.subr.mxu0 0.0
    %1146 = vmatpush1.msra.mxu0 0.0
    %1147 = vmatprep.subr.mxu0 0.0
    %1148 = vmatpush1.msra.mxu0 0.0
    %1149 = vmatprep.subr.mxu0 0.0
    %1150 = vmatpush1.msra.mxu0 0.0
    %1151 = vmatprep.subr.mxu0 0.0
    %1152 = vmatpush1.msra.mxu0 0.0
    %1153 = vmatprep.subr.mxu0 0.0
    %1154 = vmatpush1.msra.mxu0 0.0
    %1155 = vmatprep.subr.mxu0 0.0
    %1156 = vmatpush1.msra.mxu0 0.0
    %1157 = vmatprep.subr.mxu0 0.0
    %1158 = vmatpush1.msra.mxu0 0.0
    %1159 = vmatprep.subr.mxu0 0.0
    %1160 = vmatpush1.msra.mxu0 0.0
    %1161 = vmatprep.subr.mxu0 0.0
    %1162 = vmatpush1.msra.mxu0 0.0
    %1163 = vmatprep.subr.mxu0 0.0
    %1164 = vmatpush1.msra.mxu0 0.0
    %1165 = vmatprep.subr.mxu0 0.0
    %1166 = vmatpush1.msra.mxu0 0.0
    %1167 = vmatprep.subr.mxu0 0.0
    %1168 = vmatpush1.msra.mxu0 0.0
    %1169 = vmatprep.subr.mxu0 0.0
    %1170 = vmatpush1.msra.mxu0 0.0
    %1171 = vmatprep.subr.mxu0 0.0
    %1172 = vmatpush1.msra.mxu0 0.0
    %1173 = vmatprep.subr.mxu0 0.0
    %1174 = vmatpush1.msra.mxu0 0.0
    %1175 = vmatprep.subr.mxu0 0.0
    %1176 = vmatpush1.msra.mxu0 0.0
    %1177 = vmatprep.mubr.f32.mxu0 0.0
    %v1178 = vand.u32 %v600, 4294901760
    %1179 = vmatmul.mubr.f32.gmra.mrb[0].mxu0 %v1178
    %v1180 = vpop.f32.mrb[0].mxu0
    %v1181 = vadd.f32 %v1055, %v1180
    %v1182 = vpop.f32.mrb[0].mxu0
    %v1183 = vadd.f32 %v1057, %v1182
    %1184 = vdwg.mxu0
    %v1185 = vand.u32 %v563, 4294901760
    %1186 = vmatprep.subr.mxu0 %v1185
    %v1187 = vand.u32 %v562, 4294901760
    %1188 = vmatpush1.msra.mxu0 %v1187
    %v1189 = vand.u32 %v567, 4294901760
    %1190 = vmatprep.subr.mxu0 %v1189
    %v1191 = vand.u32 %v566, 4294901760
    %1192 = vmatpush1.msra.mxu0 %v1191
    %v1193 = vand.u32 %v571, 4294901760
    %1194 = vmatprep.subr.mxu0 %v1193
    %v1195 = vand.u32 %v570, 4294901760
    %1196 = vmatpush1.msra.mxu0 %v1195
    %v1197 = vand.u32 %v575, 4294901760
    %1198 = vmatprep.subr.mxu0 %v1197
    %v1199 = vand.u32 %v574, 4294901760
    %1200 = vmatpush1.msra.mxu0 %v1199
    %v1201 = vand.u32 %v579, 4294901760
    %1202 = vmatprep.subr.mxu0 %v1201
    %v1203 = vand.u32 %v578, 4294901760
    %1204 = vmatpush1.msra.mxu0 %v1203
    %v1205 = vand.u32 %v583, 4294901760
    %1206 = vmatprep.subr.mxu0 %v1205
    %v1207 = vand.u32 %v582, 4294901760
    %1208 = vmatpush1.msra.mxu0 %v1207
    %v1209 = vand.u32 %v587, 4294901760
    %1210 = vmatprep.subr.mxu0 %v1209
    %v1211 = vand.u32 %v586, 4294901760
    %1212 = vmatpush1.msra.mxu0 %v1211
    %v1213 = vand.u32 %v591, 4294901760
    %1214 = vmatprep.subr.mxu0 %v1213
    %v1215 = vand.u32 %v590, 4294901760
    %1216 = vmatpush1.msra.mxu0 %v1215
    %v1217 = vand.u32 %v595, 4294901760
    %1218 = vmatprep.subr.mxu0 %v1217
    %v1219 = vand.u32 %v594, 4294901760
    %1220 = vmatpush1.msra.mxu0 %v1219
    %1221 = vmatprep.subr.mxu0 0.0
    %1222 = vmatpush1.msra.mxu0 0.0
    %1223 = vmatprep.subr.mxu0 0.0
    %1224 = vmatpush1.msra.mxu0 0.0
    %1225 = vmatprep.subr.mxu0 0.0
    %1226 = vmatpush1.msra.mxu0 0.0
    %1227 = vmatprep.subr.mxu0 0.0
    %1228 = vmatpush1.msra.mxu0 0.0
    %1229 = vmatprep.subr.mxu0 0.0
    %1230 = vmatpush1.msra.mxu0 0.0
    %1231 = vmatprep.subr.mxu0 0.0
    %1232 = vmatpush1.msra.mxu0 0.0
    %1233 = vmatprep.subr.mxu0 0.0
    %1234 = vmatpush1.msra.mxu0 0.0
    %1235 = vmatprep.subr.mxu0 0.0
    %1236 = vmatpush1.msra.mxu0 0.0
    %1237 = vmatprep.subr.mxu0 0.0
    %1238 = vmatpush1.msra.mxu0 0.0
    %1239 = vmatprep.subr.mxu0 0.0
    %1240 = vmatpush1.msra.mxu0 0.0
    %1241 = vmatprep.subr.mxu0 0.0
    %1242 = vmatpush1.msra.mxu0 0.0
    %1243 = vmatprep.subr.mxu0 0.0
    %1244 = vmatpush1.msra.mxu0 0.0
    %1245 = vmatprep.subr.mxu0 0.0
    %1246 = vmatpush1.msra.mxu0 0.0
    %1247 = vmatprep.subr.mxu0 0.0
    %1248 = vmatpush1.msra.mxu0 0.0
    %1249 = vmatprep.subr.mxu0 0.0
    %1250 = vmatpush1.msra.mxu0 0.0
    %1251 = vmatprep.subr.mxu0 0.0
    %1252 = vmatpush1.msra.mxu0 0.0
    %1253 = vmatprep.subr.mxu0 0.0
    %1254 = vmatpush1.msra.mxu0 0.0
    %1255 = vmatprep.subr.mxu0 0.0
    %1256 = vmatpush1.msra.mxu0 0.0
    %1257 = vmatprep.subr.mxu0 0.0
    %1258 = vmatpush1.msra.mxu0 0.0
    %1259 = vmatprep.subr.mxu0 0.0
    %1260 = vmatpush1.msra.mxu0 0.0
    %1261 = vmatprep.subr.mxu0 0.0
    %1262 = vmatpush1.msra.mxu0 0.0
    %1263 = vmatprep.subr.mxu0 0.0
    %1264 = vmatpush1.msra.mxu0 0.0
    %1265 = vmatprep.subr.mxu0 0.0
    %1266 = vmatpush1.msra.mxu0 0.0
    %1267 = vmatprep.mubr.f32.mxu0 0.0
    %v1268 = vand.u32 %v600, 4294901760
    %1269 = vmatmul.mubr.f32.gmra.mrb[0].mxu0 %v1268
    %v1270 = vpop.f32.mrb[0].mxu0
    %v1271 = vadd.f32 %v1181, %v1270
    %v1272 = vpop.f32.mrb[0].mxu0
    %v1273 = vadd.f32 %v1183, %v1272
    %1274 = vdwg.mxu0
    %v1275 = vand.u32 %v565, 4294901760
    %1276 = vmatprep.subr.mxu0 %v1275
    %v1277 = vand.u32 %v564, 4294901760
    %1278 = vmatpush1.msra.mxu0 %v1277
    %v1279 = vand.u32 %v569, 4294901760
    %1280 = vmatprep.subr.mxu0 %v1279
    %v1281 = vand.u32 %v568, 4294901760
    %1282 = vmatpush1.msra.mxu0 %v1281
    %v1283 = vand.u32 %v573, 4294901760
    %1284 = vmatprep.subr.mxu0 %v1283
    %v1285 = vand.u32 %v572, 4294901760
    %1286 = vmatpush1.msra.mxu0 %v1285
    %v1287 = vand.u32 %v577, 4294901760
    %1288 = vmatprep.subr.mxu0 %v1287
    %v1289 = vand.u32 %v576, 4294901760
    %1290 = vmatpush1.msra.mxu0 %v1289
    %v1291 = vand.u32 %v581, 4294901760
    %1292 = vmatprep.subr.mxu0 %v1291
    %v1293 = vand.u32 %v580, 4294901760
    %1294 = vmatpush1.msra.mxu0 %v1293
    %v1295 = vand.u32 %v585, 4294901760
    %1296 = vmatprep.subr.mxu0 %v1295
    %v1297 = vand.u32 %v584, 4294901760
    %1298 = vmatpush1.msra.mxu0 %v1297
    %v1299 = vand.u32 %v589, 4294901760
    %1300 = vmatprep.subr.mxu0 %v1299
    %v1301 = vand.u32 %v588, 4294901760
    %1302 = vmatpush1.msra.mxu0 %v1301
    %v1303 = vand.u32 %v593, 4294901760
    %1304 = vmatprep.subr.mxu0 %v1303
    %v1305 = vand.u32 %v592, 4294901760
    %1306 = vmatpush1.msra.mxu0 %v1305
    %v1307 = vand.u32 %v597, 4294901760
    %1308 = vmatprep.subr.mxu0 %v1307
    %v1309 = vand.u32 %v596, 4294901760
    %1310 = vmatpush1.msra.mxu0 %v1309
    %1311 = vmatprep.subr.mxu0 0.0
    %1312 = vmatpush1.msra.mxu0 0.0
    %1313 = vmatprep.subr.mxu0 0.0
    %1314 = vmatpush1.msra.mxu0 0.0
    %1315 = vmatprep.subr.mxu0 0.0
    %1316 = vmatpush1.msra.mxu0 0.0
    %1317 = vmatprep.subr.mxu0 0.0
    %1318 = vmatpush1.msra.mxu0 0.0
    %1319 = vmatprep.subr.mxu0 0.0
    %1320 = vmatpush1.msra.mxu0 0.0
    %1321 = vmatprep.subr.mxu0 0.0
    %1322 = vmatpush1.msra.mxu0 0.0
    %1323 = vmatprep.subr.mxu0 0.0
    %1324 = vmatpush1.msra.mxu0 0.0
    %1325 = vmatprep.subr.mxu0 0.0
    %1326 = vmatpush1.msra.mxu0 0.0
    %1327 = vmatprep.subr.mxu0 0.0
    %1328 = vmatpush1.msra.mxu0 0.0
    %1329 = vmatprep.subr.mxu0 0.0
    %1330 = vmatpush1.msra.mxu0 0.0
    %1331 = vmatprep.subr.mxu0 0.0
    %1332 = vmatpush1.msra.mxu0 0.0
    %1333 = vmatprep.subr.mxu0 0.0
    %1334 = vmatpush1.msra.mxu0 0.0
    %1335 = vmatprep.subr.mxu0 0.0
    %1336 = vmatpush1.msra.mxu0 0.0
    %1337 = vmatprep.subr.mxu0 0.0
    %1338 = vmatpush1.msra.mxu0 0.0
    %1339 = vmatprep.subr.mxu0 0.0
    %1340 = vmatpush1.msra.mxu0 0.0
    %1341 = vmatprep.subr.mxu0 0.0
    %1342 = vmatpush1.msra.mxu0 0.0
    %1343 = vmatprep.subr.mxu0 0.0
    %1344 = vmatpush1.msra.mxu0 0.0
    %1345 = vmatprep.subr.mxu0 0.0
    %1346 = vmatpush1.msra.mxu0 0.0
    %1347 = vmatprep.subr.mxu0 0.0
    %1348 = vmatpush1.msra.mxu0 0.0
    %1349 = vmatprep.subr.mxu0 0.0
    %1350 = vmatpush1.msra.mxu0 0.0
    %1351 = vmatprep.subr.mxu0 0.0
    %1352 = vmatpush1.msra.mxu0 0.0
    %1353 = vmatprep.subr.mxu0 0.0
    %1354 = vmatpush1.msra.mxu0 0.0
    %1355 = vmatprep.subr.mxu0 0.0
    %1356 = vmatpush1.msra.mxu0 0.0
    %1357 = vmatprep.mubr.f32.mxu0 0.0
    %v1358 = vand.u32 %v600, 4294901760
    %v1359 = vsub.f32 %v600, %v1358
    %v1360 = vand.u32 %v1359, 4294901760
    %v1361 = vsub.f32 %v1359, %v1360
    %v1362 = vand.u32 %v1361, 4294901760
    %1363 = vmatmul.mubr.f32.gmra.mrb[0].mxu0 %v1362
    %v1364 = vpop.f32.mrb[0].mxu0
    %v1365 = vadd.f32 0.0, %v1364
    %v1366 = vpop.f32.mrb[0].mxu0
    %v1367 = vadd.f32 0.0, %v1366
    %1368 = vdwg.mxu0
    %v1369 = vand.u32 %v565, 4294901760
    %v1370 = vsub.f32 %v565, %v1369
    %v1371 = vand.u32 %v1370, 4294901760
    %v1372 = vsub.f32 %v1370, %v1371
    %v1373 = vand.u32 %v1372, 4294901760
    %1374 = vmatprep.subr.mxu0 %v1373
    %v1375 = vand.u32 %v564, 4294901760
    %v1376 = vsub.f32 %v564, %v1375
    %v1377 = vand.u32 %v1376, 4294901760
    %v1378 = vsub.f32 %v1376, %v1377
    %v1379 = vand.u32 %v1378, 4294901760
    %1380 = vmatpush1.msra.mxu0 %v1379
    %v1381 = vand.u32 %v569, 4294901760
    %v1382 = vsub.f32 %v569, %v1381
    %v1383 = vand.u32 %v1382, 4294901760
    %v1384 = vsub.f32 %v1382, %v1383
    %v1385 = vand.u32 %v1384, 4294901760
    %1386 = vmatprep.subr.mxu0 %v1385
    %v1387 = vand.u32 %v568, 4294901760
    %v1388 = vsub.f32 %v568, %v1387
    %v1389 = vand.u32 %v1388, 4294901760
    %v1390 = vsub.f32 %v1388, %v1389
    %v1391 = vand.u32 %v1390, 4294901760
    %1392 = vmatpush1.msra.mxu0 %v1391
    %v1393 = vand.u32 %v573, 4294901760
    %v1394 = vsub.f32 %v573, %v1393
    %v1395 = vand.u32 %v1394, 4294901760
    %v1396 = vsub.f32 %v1394, %v1395
    %v1397 = vand.u32 %v1396, 4294901760
    %1398 = vmatprep.subr.mxu0 %v1397
    %v1399 = vand.u32 %v572, 4294901760
    %v1400 = vsub.f32 %v572, %v1399
    %v1401 = vand.u32 %v1400, 4294901760
    %v1402 = vsub.f32 %v1400, %v1401
    %v1403 = vand.u32 %v1402, 4294901760
    %1404 = vmatpush1.msra.mxu0 %v1403
    %v1405 = vand.u32 %v577, 4294901760
    %v1406 = vsub.f32 %v577, %v1405
    %v1407 = vand.u32 %v1406, 4294901760
    %v1408 = vsub.f32 %v1406, %v1407
    %v1409 = vand.u32 %v1408, 4294901760
    %1410 = vmatprep.subr.mxu0 %v1409
    %v1411 = vand.u32 %v576, 4294901760
    %v1412 = vsub.f32 %v576, %v1411
    %v1413 = vand.u32 %v1412, 4294901760
    %v1414 = vsub.f32 %v1412, %v1413
    %v1415 = vand.u32 %v1414, 4294901760
    %1416 = vmatpush1.msra.mxu0 %v1415
    %v1417 = vand.u32 %v581, 4294901760
    %v1418 = vsub.f32 %v581, %v1417
    %v1419 = vand.u32 %v1418, 4294901760
    %v1420 = vsub.f32 %v1418, %v1419
    %v1421 = vand.u32 %v1420, 4294901760
    %1422 = vmatprep.subr.mxu0 %v1421
    %v1423 = vand.u32 %v580, 4294901760
    %v1424 = vsub.f32 %v580, %v1423
    %v1425 = vand.u32 %v1424, 4294901760
    %v1426 = vsub.f32 %v1424, %v1425
    %v1427 = vand.u32 %v1426, 4294901760
    %1428 = vmatpush1.msra.mxu0 %v1427
    %v1429 = vand.u32 %v585, 4294901760
    %v1430 = vsub.f32 %v585, %v1429
    %v1431 = vand.u32 %v1430, 4294901760
    %v1432 = vsub.f32 %v1430, %v1431
    %v1433 = vand.u32 %v1432, 4294901760
    %1434 = vmatprep.subr.mxu0 %v1433
    %v1435 = vand.u32 %v584, 4294901760
    %v1436 = vsub.f32 %v584, %v1435
    %v1437 = vand.u32 %v1436, 4294901760
    %v1438 = vsub.f32 %v1436, %v1437
    %v1439 = vand.u32 %v1438, 4294901760
    %1440 = vmatpush1.msra.mxu0 %v1439
    %v1441 = vand.u32 %v589, 4294901760
    %v1442 = vsub.f32 %v589, %v1441
    %v1443 = vand.u32 %v1442, 4294901760
    %v1444 = vsub.f32 %v1442, %v1443
    %v1445 = vand.u32 %v1444, 4294901760
    %1446 = vmatprep.subr.mxu0 %v1445
    %v1447 = vand.u32 %v588, 4294901760
    %v1448 = vsub.f32 %v588, %v1447
    %v1449 = vand.u32 %v1448, 4294901760
    %v1450 = vsub.f32 %v1448, %v1449
    %v1451 = vand.u32 %v1450, 4294901760
    %1452 = vmatpush1.msra.mxu0 %v1451
    %v1453 = vand.u32 %v593, 4294901760
    %v1454 = vsub.f32 %v593, %v1453
    %v1455 = vand.u32 %v1454, 4294901760
    %v1456 = vsub.f32 %v1454, %v1455
    %v1457 = vand.u32 %v1456, 4294901760
    %1458 = vmatprep.subr.mxu0 %v1457
    %v1459 = vand.u32 %v592, 4294901760
    %v1460 = vsub.f32 %v592, %v1459
    %v1461 = vand.u32 %v1460, 4294901760
    %v1462 = vsub.f32 %v1460, %v1461
    %v1463 = vand.u32 %v1462, 4294901760
    %1464 = vmatpush1.msra.mxu0 %v1463
    %v1465 = vand.u32 %v597, 4294901760
    %v1466 = vsub.f32 %v597, %v1465
    %v1467 = vand.u32 %v1466, 4294901760
    %v1468 = vsub.f32 %v1466, %v1467
    %v1469 = vand.u32 %v1468, 4294901760
    %1470 = vmatprep.subr.mxu0 %v1469
    %v1471 = vand.u32 %v596, 4294901760
    %v1472 = vsub.f32 %v596, %v1471
    %v1473 = vand.u32 %v1472, 4294901760
    %v1474 = vsub.f32 %v1472, %v1473
    %v1475 = vand.u32 %v1474, 4294901760
    %1476 = vmatpush1.msra.mxu0 %v1475
    %1477 = vmatprep.subr.mxu0 0.0
    %1478 = vmatpush1.msra.mxu0 0.0
    %1479 = vmatprep.subr.mxu0 0.0
    %1480 = vmatpush1.msra.mxu0 0.0
    %1481 = vmatprep.subr.mxu0 0.0
    %1482 = vmatpush1.msra.mxu0 0.0
    %1483 = vmatprep.subr.mxu0 0.0
    %1484 = vmatpush1.msra.mxu0 0.0
    %1485 = vmatprep.subr.mxu0 0.0
    %1486 = vmatpush1.msra.mxu0 0.0
    %1487 = vmatprep.subr.mxu0 0.0
    %1488 = vmatpush1.msra.mxu0 0.0
    %1489 = vmatprep.subr.mxu0 0.0
    %1490 = vmatpush1.msra.mxu0 0.0
    %1491 = vmatprep.subr.mxu0 0.0
    %1492 = vmatpush1.msra.mxu0 0.0
    %1493 = vmatprep.subr.mxu0 0.0
    %1494 = vmatpush1.msra.mxu0 0.0
    %1495 = vmatprep.subr.mxu0 0.0
    %1496 = vmatpush1.msra.mxu0 0.0
    %1497 = vmatprep.subr.mxu0 0.0
    %1498 = vmatpush1.msra.mxu0 0.0
    %1499 = vmatprep.subr.mxu0 0.0
    %1500 = vmatpush1.msra.mxu0 0.0
    %1501 = vmatprep.subr.mxu0 0.0
    %1502 = vmatpush1.msra.mxu0 0.0
    %1503 = vmatprep.subr.mxu0 0.0
    %1504 = vmatpush1.msra.mxu0 0.0
    %1505 = vmatprep.subr.mxu0 0.0
    %1506 = vmatpush1.msra.mxu0 0.0
    %1507 = vmatprep.subr.mxu0 0.0
    %1508 = vmatpush1.msra.mxu0 0.0
    %1509 = vmatprep.subr.mxu0 0.0
    %1510 = vmatpush1.msra.mxu0 0.0
    %1511 = vmatprep.subr.mxu0 0.0
    %1512 = vmatpush1.msra.mxu0 0.0
    %1513 = vmatprep.subr.mxu0 0.0
    %1514 = vmatpush1.msra.mxu0 0.0
    %1515 = vmatprep.subr.mxu0 0.0
    %1516 = vmatpush1.msra.mxu0 0.0
    %1517 = vmatprep.subr.mxu0 0.0
    %1518 = vmatpush1.msra.mxu0 0.0
    %1519 = vmatprep.subr.mxu0 0.0
    %1520 = vmatpush1.msra.mxu0 0.0
    %1521 = vmatprep.subr.mxu0 0.0
    %1522 = vmatpush1.msra.mxu0 0.0
    %1523 = vmatprep.mubr.f32.mxu0 0.0
    %v1524 = vand.u32 %v600, 4294901760
    %1525 = vmatmul.mubr.f32.gmra.mrb[0].mxu0 %v1524
    %v1526 = vpop.f32.mrb[0].mxu0
    %v1527 = vadd.f32 %v1365, %v1526
    %v1528 = vpop.f32.mrb[0].mxu0
    %v1529 = vadd.f32 %v1367, %v1528
    %1530 = vdwg.mxu0
    %v1531 = vand.u32 %v565, 4294901760
    %v1532 = vsub.f32 %v565, %v1531
    %1533 = vmatprep.subr.mxu0 %v1532
    %v1534 = vand.u32 %v564, 4294901760
    %v1535 = vsub.f32 %v564, %v1534
    %1536 = vmatpush1.msra.mxu0 %v1535
    %v1537 = vand.u32 %v569, 4294901760
    %v1538 = vsub.f32 %v569, %v1537
    %1539 = vmatprep.subr.mxu0 %v1538
    %v1540 = vand.u32 %v568, 4294901760
    %v1541 = vsub.f32 %v568, %v1540
    %1542 = vmatpush1.msra.mxu0 %v1541
    %v1543 = vand.u32 %v573, 4294901760
    %v1544 = vsub.f32 %v573, %v1543
    %1545 = vmatprep.subr.mxu0 %v1544
    %v1546 = vand.u32 %v572, 4294901760
    %v1547 = vsub.f32 %v572, %v1546
    %1548 = vmatpush1.msra.mxu0 %v1547
    %v1549 = vand.u32 %v577, 4294901760
    %v1550 = vsub.f32 %v577, %v1549
    %1551 = vmatprep.subr.mxu0 %v1550
    %v1552 = vand.u32 %v576, 4294901760
    %v1553 = vsub.f32 %v576, %v1552
    %1554 = vmatpush1.msra.mxu0 %v1553
    %v1555 = vand.u32 %v581, 4294901760
    %v1556 = vsub.f32 %v581, %v1555
    %1557 = vmatprep.subr.mxu0 %v1556
    %v1558 = vand.u32 %v580, 4294901760
    %v1559 = vsub.f32 %v580, %v1558
    %1560 = vmatpush1.msra.mxu0 %v1559
    %v1561 = vand.u32 %v585, 4294901760
    %v1562 = vsub.f32 %v585, %v1561
    %1563 = vmatprep.subr.mxu0 %v1562
    %v1564 = vand.u32 %v584, 4294901760
    %v1565 = vsub.f32 %v584, %v1564
    %1566 = vmatpush1.msra.mxu0 %v1565
    %v1567 = vand.u32 %v589, 4294901760
    %v1568 = vsub.f32 %v589, %v1567
    %1569 = vmatprep.subr.mxu0 %v1568
    %v1570 = vand.u32 %v588, 4294901760
    %v1571 = vsub.f32 %v588, %v1570
    %1572 = vmatpush1.msra.mxu0 %v1571
    %v1573 = vand.u32 %v593, 4294901760
    %v1574 = vsub.f32 %v593, %v1573
    %1575 = vmatprep.subr.mxu0 %v1574
    %v1576 = vand.u32 %v592, 4294901760
    %v1577 = vsub.f32 %v592, %v1576
    %1578 = vmatpush1.msra.mxu0 %v1577
    %v1579 = vand.u32 %v597, 4294901760
    %v1580 = vsub.f32 %v597, %v1579
    %1581 = vmatprep.subr.mxu0 %v1580
    %v1582 = vand.u32 %v596, 4294901760
    %v1583 = vsub.f32 %v596, %v1582
    %1584 = vmatpush1.msra.mxu0 %v1583
    %1585 = vmatprep.subr.mxu0 0.0
    %1586 = vmatpush1.msra.mxu0 0.0
    %1587 = vmatprep.subr.mxu0 0.0
    %1588 = vmatpush1.msra.mxu0 0.0
    %1589 = vmatprep.subr.mxu0 0.0
    %1590 = vmatpush1.msra.mxu0 0.0
    %1591 = vmatprep.subr.mxu0 0.0
    %1592 = vmatpush1.msra.mxu0 0.0
    %1593 = vmatprep.subr.mxu0 0.0
    %1594 = vmatpush1.msra.mxu0 0.0
    %1595 = vmatprep.subr.mxu0 0.0
    %1596 = vmatpush1.msra.mxu0 0.0
    %1597 = vmatprep.subr.mxu0 0.0
    %1598 = vmatpush1.msra.mxu0 0.0
    %1599 = vmatprep.subr.mxu0 0.0
    %1600 = vmatpush1.msra.mxu0 0.0
    %1601 = vmatprep.subr.mxu0 0.0
    %1602 = vmatpush1.msra.mxu0 0.0
    %1603 = vmatprep.subr.mxu0 0.0
    %1604 = vmatpush1.msra.mxu0 0.0
    %1605 = vmatprep.subr.mxu0 0.0
    %1606 = vmatpush1.msra.mxu0 0.0
    %1607 = vmatprep.subr.mxu0 0.0
    %1608 = vmatpush1.msra.mxu0 0.0
    %1609 = vmatprep.subr.mxu0 0.0
    %1610 = vmatpush1.msra.mxu0 0.0
    %1611 = vmatprep.subr.mxu0 0.0
    %1612 = vmatpush1.msra.mxu0 0.0
    %1613 = vmatprep.subr.mxu0 0.0
    %1614 = vmatpush1.msra.mxu0 0.0
    %1615 = vmatprep.subr.mxu0 0.0
    %1616 = vmatpush1.msra.mxu0 0.0
    %1617 = vmatprep.subr.mxu0 0.0
    %1618 = vmatpush1.msra.mxu0 0.0
    %1619 = vmatprep.subr.mxu0 0.0
    %1620 = vmatpush1.msra.mxu0 0.0
    %1621 = vmatprep.subr.mxu0 0.0
    %1622 = vmatpush1.msra.mxu0 0.0
    %1623 = vmatprep.subr.mxu0 0.0
    %1624 = vmatpush1.msra.mxu0 0.0
    %1625 = vmatprep.subr.mxu0 0.0
    %1626 = vmatpush1.msra.mxu0 0.0
    %1627 = vmatprep.subr.mxu0 0.0
    %1628 = vmatpush1.msra.mxu0 0.0
    %1629 = vmatprep.subr.mxu0 0.0
    %1630 = vmatpush1.msra.mxu0 0.0
    %1631 = vmatprep.mubr.f32.mxu0 0.0
    %v1632 = vand.u32 %v600, 4294901760
    %v1633 = vsub.f32 %v600, %v1632
    %1634 = vmatmul.mubr.f32.gmra.mrb[0].mxu0 %v1633
    %v1635 = vpop.f32.mrb[0].mxu0
    %v1636 = vadd.f32 %v1527, %v1635
    %v1637 = vpop.f32.mrb[0].mxu0
    %v1638 = vadd.f32 %v1529, %v1637
    %1639 = vdwg.mxu0
    %v1640 = vand.u32 %v565, 4294901760
    %1641 = vmatprep.subr.mxu0 %v1640
    %v1642 = vand.u32 %v564, 4294901760
    %1643 = vmatpush1.msra.mxu0 %v1642
    %v1644 = vand.u32 %v569, 4294901760
    %1645 = vmatprep.subr.mxu0 %v1644
    %v1646 = vand.u32 %v568, 4294901760
    %1647 = vmatpush1.msra.mxu0 %v1646
    %v1648 = vand.u32 %v573, 4294901760
    %1649 = vmatprep.subr.mxu0 %v1648
    %v1650 = vand.u32 %v572, 4294901760
    %1651 = vmatpush1.msra.mxu0 %v1650
    %v1652 = vand.u32 %v577, 4294901760
    %1653 = vmatprep.subr.mxu0 %v1652
    %v1654 = vand.u32 %v576, 4294901760
    %1655 = vmatpush1.msra.mxu0 %v1654
    %v1656 = vand.u32 %v581, 4294901760
    %1657 = vmatprep.subr.mxu0 %v1656
    %v1658 = vand.u32 %v580, 4294901760
    %1659 = vmatpush1.msra.mxu0 %v1658
    %v1660 = vand.u32 %v585, 4294901760
    %1661 = vmatprep.subr.mxu0 %v1660
    %v1662 = vand.u32 %v584, 4294901760
    %1663 = vmatpush1.msra.mxu0 %v1662
    %v1664 = vand.u32 %v589, 4294901760
    %1665 = vmatprep.subr.mxu0 %v1664
    %v1666 = vand.u32 %v588, 4294901760
    %1667 = vmatpush1.msra.mxu0 %v1666
    %v1668 = vand.u32 %v593, 4294901760
    %1669 = vmatprep.subr.mxu0 %v1668
    %v1670 = vand.u32 %v592, 4294901760
    %1671 = vmatpush1.msra.mxu0 %v1670
    %v1672 = vand.u32 %v597, 4294901760
    %1673 = vmatprep.subr.mxu0 %v1672
    %v1674 = vand.u32 %v596, 4294901760
    %1675 = vmatpush1.msra.mxu0 %v1674
    %1676 = vmatprep.subr.mxu0 0.0
    %1677 = vmatpush1.msra.mxu0 0.0
    %1678 = vmatprep.subr.mxu0 0.0
    %1679 = vmatpush1.msra.mxu0 0.0
    %1680 = vmatprep.subr.mxu0 0.0
    %1681 = vmatpush1.msra.mxu0 0.0
    %1682 = vmatprep.subr.mxu0 0.0
    %1683 = vmatpush1.msra.mxu0 0.0
    %1684 = vmatprep.subr.mxu0 0.0
    %1685 = vmatpush1.msra.mxu0 0.0
    %1686 = vmatprep.subr.mxu0 0.0
    %1687 = vmatpush1.msra.mxu0 0.0
    %1688 = vmatprep.subr.mxu0 0.0
    %1689 = vmatpush1.msra.mxu0 0.0
    %1690 = vmatprep.subr.mxu0 0.0
    %1691 = vmatpush1.msra.mxu0 0.0
    %1692 = vmatprep.subr.mxu0 0.0
    %1693 = vmatpush1.msra.mxu0 0.0
    %1694 = vmatprep.subr.mxu0 0.0
    %1695 = vmatpush1.msra.mxu0 0.0
    %1696 = vmatprep.subr.mxu0 0.0
    %1697 = vmatpush1.msra.mxu0 0.0
    %1698 = vmatprep.subr.mxu0 0.0
    %1699 = vmatpush1.msra.mxu0 0.0
    %1700 = vmatprep.subr.mxu0 0.0
    %1701 = vmatpush1.msra.mxu0 0.0
    %1702 = vmatprep.subr.mxu0 0.0
    %1703 = vmatpush1.msra.mxu0 0.0
    %1704 = vmatprep.subr.mxu0 0.0
    %1705 = vmatpush1.msra.mxu0 0.0
    %1706 = vmatprep.subr.mxu0 0.0
    %1707 = vmatpush1.msra.mxu0 0.0
    %1708 = vmatprep.subr.mxu0 0.0
    %1709 = vmatpush1.msra.mxu0 0.0
    %1710 = vmatprep.subr.mxu0 0.0
    %1711 = vmatpush1.msra.mxu0 0.0
    %1712 = vmatprep.subr.mxu0 0.0
    %1713 = vmatpush1.msra.mxu0 0.0
    %1714 = vmatprep.subr.mxu0 0.0
    %1715 = vmatpush1.msra.mxu0 0.0
    %1716 = vmatprep.subr.mxu0 0.0
    %1717 = vmatpush1.msra.mxu0 0.0
    %1718 = vmatprep.subr.mxu0 0.0
    %1719 = vmatpush1.msra.mxu0 0.0
    %1720 = vmatprep.subr.mxu0 0.0
    %1721 = vmatpush1.msra.mxu0 0.0
    %1722 = vmatprep.mubr.f32.mxu0 0.0
    %v1723 = vand.u32 %v600, 4294901760
    %v1724 = vsub.f32 %v600, %v1723
    %v1725 = vand.u32 %v1724, 4294901760
    %1726 = vmatmul.mubr.f32.gmra.mrb[0].mxu0 %v1725
    %v1727 = vpop.f32.mrb[0].mxu0
    %v1728 = vadd.f32 %v1636, %v1727
    %v1729 = vpop.f32.mrb[0].mxu0
    %v1730 = vadd.f32 %v1638, %v1729
    %1731 = vdwg.mxu0
    %v1732 = vand.u32 %v565, 4294901760
    %v1733 = vsub.f32 %v565, %v1732
    %v1734 = vand.u32 %v1733, 4294901760
    %1735 = vmatprep.subr.mxu0 %v1734
    %v1736 = vand.u32 %v564, 4294901760
    %v1737 = vsub.f32 %v564, %v1736
    %v1738 = vand.u32 %v1737, 4294901760
    %1739 = vmatpush1.msra.mxu0 %v1738
    %v1740 = vand.u32 %v569, 4294901760
    %v1741 = vsub.f32 %v569, %v1740
    %v1742 = vand.u32 %v1741, 4294901760
    %1743 = vmatprep.subr.mxu0 %v1742
    %v1744 = vand.u32 %v568, 4294901760
    %v1745 = vsub.f32 %v568, %v1744
    %v1746 = vand.u32 %v1745, 4294901760
    %1747 = vmatpush1.msra.mxu0 %v1746
    %v1748 = vand.u32 %v573, 4294901760
    %v1749 = vsub.f32 %v573, %v1748
    %v1750 = vand.u32 %v1749, 4294901760
    %1751 = vmatprep.subr.mxu0 %v1750
    %v1752 = vand.u32 %v572, 4294901760
    %v1753 = vsub.f32 %v572, %v1752
    %v1754 = vand.u32 %v1753, 4294901760
    %1755 = vmatpush1.msra.mxu0 %v1754
    %v1756 = vand.u32 %v577, 4294901760
    %v1757 = vsub.f32 %v577, %v1756
    %v1758 = vand.u32 %v1757, 4294901760
    %1759 = vmatprep.subr.mxu0 %v1758
    %v1760 = vand.u32 %v576, 4294901760
    %v1761 = vsub.f32 %v576, %v1760
    %v1762 = vand.u32 %v1761, 4294901760
    %1763 = vmatpush1.msra.mxu0 %v1762
    %v1764 = vand.u32 %v581, 4294901760
    %v1765 = vsub.f32 %v581, %v1764
    %v1766 = vand.u32 %v1765, 4294901760
    %1767 = vmatprep.subr.mxu0 %v1766
    %v1768 = vand.u32 %v580, 4294901760
    %v1769 = vsub.f32 %v580, %v1768
    %v1770 = vand.u32 %v1769, 4294901760
    %1771 = vmatpush1.msra.mxu0 %v1770
    %v1772 = vand.u32 %v585, 4294901760
    %v1773 = vsub.f32 %v585, %v1772
    %v1774 = vand.u32 %v1773, 4294901760
    %1775 = vmatprep.subr.mxu0 %v1774
    %v1776 = vand.u32 %v584, 4294901760
    %v1777 = vsub.f32 %v584, %v1776
    %v1778 = vand.u32 %v1777, 4294901760
    %1779 = vmatpush1.msra.mxu0 %v1778
    %v1780 = vand.u32 %v589, 4294901760
    %v1781 = vsub.f32 %v589, %v1780
    %v1782 = vand.u32 %v1781, 4294901760
    %1783 = vmatprep.subr.mxu0 %v1782
    %v1784 = vand.u32 %v588, 4294901760
    %v1785 = vsub.f32 %v588, %v1784
    %v1786 = vand.u32 %v1785, 4294901760
    %1787 = vmatpush1.msra.mxu0 %v1786
    %v1788 = vand.u32 %v593, 4294901760
    %v1789 = vsub.f32 %v593, %v1788
    %v1790 = vand.u32 %v1789, 4294901760
    %1791 = vmatprep.subr.mxu0 %v1790
    %v1792 = vand.u32 %v592, 4294901760
    %v1793 = vsub.f32 %v592, %v1792
    %v1794 = vand.u32 %v1793, 4294901760
    %1795 = vmatpush1.msra.mxu0 %v1794
    %v1796 = vand.u32 %v597, 4294901760
    %v1797 = vsub.f32 %v597, %v1796
    %v1798 = vand.u32 %v1797, 4294901760
    %1799 = vmatprep.subr.mxu0 %v1798
    %v1800 = vand.u32 %v596, 4294901760
    %v1801 = vsub.f32 %v596, %v1800
    %v1802 = vand.u32 %v1801, 4294901760
    %1803 = vmatpush1.msra.mxu0 %v1802
    %1804 = vmatprep.subr.mxu0 0.0
    %1805 = vmatpush1.msra.mxu0 0.0
    %1806 = vmatprep.subr.mxu0 0.0
    %1807 = vmatpush1.msra.mxu0 0.0
    %1808 = vmatprep.subr.mxu0 0.0
    %1809 = vmatpush1.msra.mxu0 0.0
    %1810 = vmatprep.subr.mxu0 0.0
    %1811 = vmatpush1.msra.mxu0 0.0
    %1812 = vmatprep.subr.mxu0 0.0
    %1813 = vmatpush1.msra.mxu0 0.0
    %1814 = vmatprep.subr.mxu0 0.0
    %1815 = vmatpush1.msra.mxu0 0.0
    %1816 = vmatprep.subr.mxu0 0.0
    %1817 = vmatpush1.msra.mxu0 0.0
    %1818 = vmatprep.subr.mxu0 0.0
    %1819 = vmatpush1.msra.mxu0 0.0
    %1820 = vmatprep.subr.mxu0 0.0
    %1821 = vmatpush1.msra.mxu0 0.0
    %1822 = vmatprep.subr.mxu0 0.0
    %1823 = vmatpush1.msra.mxu0 0.0
    %1824 = vmatprep.subr.mxu0 0.0
    %1825 = vmatpush1.msra.mxu0 0.0
    %1826 = vmatprep.subr.mxu0 0.0
    %1827 = vmatpush1.msra.mxu0 0.0
    %1828 = vmatprep.subr.mxu0 0.0
    %1829 = vmatpush1.msra.mxu0 0.0
    %1830 = vmatprep.subr.mxu0 0.0
    %1831 = vmatpush1.msra.mxu0 0.0
    %1832 = vmatprep.subr.mxu0 0.0
    %1833 = vmatpush1.msra.mxu0 0.0
    %1834 = vmatprep.subr.mxu0 0.0
    %1835 = vmatpush1.msra.mxu0 0.0
    %1836 = vmatprep.subr.mxu0 0.0
    %1837 = vmatpush1.msra.mxu0 0.0
    %1838 = vmatprep.subr.mxu0 0.0
    %1839 = vmatpush1.msra.mxu0 0.0
    %1840 = vmatprep.subr.mxu0 0.0
    %1841 = vmatpush1.msra.mxu0 0.0
    %1842 = vmatprep.subr.mxu0 0.0
    %1843 = vmatpush1.msra.mxu0 0.0
    %1844 = vmatprep.subr.mxu0 0.0
    %1845 = vmatpush1.msra.mxu0 0.0
    %1846 = vmatprep.subr.mxu0 0.0
    %1847 = vmatpush1.msra.mxu0 0.0
    %1848 = vmatprep.subr.mxu0 0.0
    %1849 = vmatpush1.msra.mxu0 0.0
    %1850 = vmatprep.mubr.f32.mxu0 0.0
    %v1851 = vand.u32 %v600, 4294901760
    %1852 = vmatmul.mubr.f32.gmra.mrb[0].mxu0 %v1851
    %v1853 = vpop.f32.mrb[0].mxu0
    %v1854 = vadd.f32 %v1728, %v1853
    %v1855 = vpop.f32.mrb[0].mxu0
    %v1856 = vadd.f32 %v1730, %v1855
    %1857 = vdwg.mxu0
    %v1858 = vand.u32 %v565, 4294901760
    %1859 = vmatprep.subr.mxu0 %v1858
    %v1860 = vand.u32 %v564, 4294901760
    %1861 = vmatpush1.msra.mxu0 %v1860
    %v1862 = vand.u32 %v569, 4294901760
    %1863 = vmatprep.subr.mxu0 %v1862
    %v1864 = vand.u32 %v568, 4294901760
    %1865 = vmatpush1.msra.mxu0 %v1864
    %v1866 = vand.u32 %v573, 4294901760
    %1867 = vmatprep.subr.mxu0 %v1866
    %v1868 = vand.u32 %v572, 4294901760
    %1869 = vmatpush1.msra.mxu0 %v1868
    %v1870 = vand.u32 %v577, 4294901760
    %1871 = vmatprep.subr.mxu0 %v1870
    %v1872 = vand.u32 %v576, 4294901760
    %1873 = vmatpush1.msra.mxu0 %v1872
    %v1874 = vand.u32 %v581, 4294901760
    %1875 = vmatprep.subr.mxu0 %v1874
    %v1876 = vand.u32 %v580, 4294901760
    %1877 = vmatpush1.msra.mxu0 %v1876
    %v1878 = vand.u32 %v585, 4294901760
    %1879 = vmatprep.subr.mxu0 %v1878
    %v1880 = vand.u32 %v584, 4294901760
    %1881 = vmatpush1.msra.mxu0 %v1880
    %v1882 = vand.u32 %v589, 4294901760
    %1883 = vmatprep.subr.mxu0 %v1882
    %v1884 = vand.u32 %v588, 4294901760
    %1885 = vmatpush1.msra.mxu0 %v1884
    %v1886 = vand.u32 %v593, 4294901760
    %1887 = vmatprep.subr.mxu0 %v1886
    %v1888 = vand.u32 %v592, 4294901760
    %1889 = vmatpush1.msra.mxu0 %v1888
    %v1890 = vand.u32 %v597, 4294901760
    %1891 = vmatprep.subr.mxu0 %v1890
    %v1892 = vand.u32 %v596, 4294901760
    %1893 = vmatpush1.msra.mxu0 %v1892
    %1894 = vmatprep.subr.mxu0 0.0
    %1895 = vmatpush1.msra.mxu0 0.0
    %1896 = vmatprep.subr.mxu0 0.0
    %1897 = vmatpush1.msra.mxu0 0.0
    %1898 = vmatprep.subr.mxu0 0.0
    %1899 = vmatpush1.msra.mxu0 0.0
    %1900 = vmatprep.subr.mxu0 0.0
    %1901 = vmatpush1.msra.mxu0 0.0
    %1902 = vmatprep.subr.mxu0 0.0
    %1903 = vmatpush1.msra.mxu0 0.0
    %1904 = vmatprep.subr.mxu0 0.0
    %1905 = vmatpush1.msra.mxu0 0.0
    %1906 = vmatprep.subr.mxu0 0.0
    %1907 = vmatpush1.msra.mxu0 0.0
    %1908 = vmatprep.subr.mxu0 0.0
    %1909 = vmatpush1.msra.mxu0 0.0
    %1910 = vmatprep.subr.mxu0 0.0
    %1911 = vmatpush1.msra.mxu0 0.0
    %1912 = vmatprep.subr.mxu0 0.0
    %1913 = vmatpush1.msra.mxu0 0.0
    %1914 = vmatprep.subr.mxu0 0.0
    %1915 = vmatpush1.msra.mxu0 0.0
    %1916 = vmatprep.subr.mxu0 0.0
    %1917 = vmatpush1.msra.mxu0 0.0
    %1918 = vmatprep.subr.mxu0 0.0
    %1919 = vmatpush1.msra.mxu0 0.0
    %1920 = vmatprep.subr.mxu0 0.0
    %1921 = vmatpush1.msra.mxu0 0.0
    %1922 = vmatprep.subr.mxu0 0.0
    %1923 = vmatpush1.msra.mxu0 0.0
    %1924 = vmatprep.subr.mxu0 0.0
    %1925 = vmatpush1.msra.mxu0 0.0
    %1926 = vmatprep.subr.mxu0 0.0
    %1927 = vmatpush1.msra.mxu0 0.0
    %1928 = vmatprep.subr.mxu0 0.0
    %1929 = vmatpush1.msra.mxu0 0.0
    %1930 = vmatprep.subr.mxu0 0.0
    %1931 = vmatpush1.msra.mxu0 0.0
    %1932 = vmatprep.subr.mxu0 0.0
    %1933 = vmatpush1.msra.mxu0 0.0
    %1934 = vmatprep.subr.mxu0 0.0
    %1935 = vmatpush1.msra.mxu0 0.0
    %1936 = vmatprep.subr.mxu0 0.0
    %1937 = vmatpush1.msra.mxu0 0.0
    %1938 = vmatprep.subr.mxu0 0.0
    %1939 = vmatpush1.msra.mxu0 0.0
    %1940 = vmatprep.mubr.f32.mxu0 0.0
    %v1941 = vand.u32 %v600, 4294901760
    %1942 = vmatmul.mubr.f32.gmra.mrb[0].mxu0 %v1941
    %v1943 = vpop.f32.mrb[0].mxu0
    %v1944 = vadd.f32 %v1854, %v1943
    %v1945 = vpop.f32.mrb[0].mxu0
    %v1946 = vadd.f32 %v1856, %v1945
    %1947 = vdwg.mxu0
    %v1948 = vld [vmem:[%s3] sm:$0xff]
    %v1949 = vld [vmem:[%s4] sm:$0xff]
    %1951 = vset.pattern.permute.xlu0 0
    %1952 = vperm.xlu0 %1951, %v1949
    %v1953 = vpop.permute.xlu0 %1952
    %vm1955 = vcmask 64512
    %v1957 = vsel %vm1955, %v1948, 0
    %v1959 = vand.u32 %v1273, 4294901760
    %1960 = vmatprep.subr.mxu0 %v1959
    %v1961 = vand.u32 %v1271, 4294901760
    %1962 = vmatpush1.msra.mxu0 %v1961
    %1963 = vmatprep.subr.mxu0 0.0
    %1964 = vmatpush1.msra.mxu0 0.0
    %1965 = vmatprep.subr.mxu0 0.0
    %1966 = vmatpush1.msra.mxu0 0.0
    %1967 = vmatprep.subr.mxu0 0.0
    %1968 = vmatpush1.msra.mxu0 0.0
    %1969 = vmatprep.subr.mxu0 0.0
    %1970 = vmatpush1.msra.mxu0 0.0
    %1971 = vmatprep.subr.mxu0 0.0
    %1972 = vmatpush1.msra.mxu0 0.0
    %1973 = vmatprep.subr.mxu0 0.0
    %1974 = vmatpush1.msra.mxu0 0.0
    %1975 = vmatprep.subr.mxu0 0.0
    %1976 = vmatpush1.msra.mxu0 0.0
    %1977 = vmatprep.subr.mxu0 0.0
    %1978 = vmatpush1.msra.mxu0 0.0
    %1979 = vmatprep.subr.mxu0 0.0
    %1980 = vmatpush1.msra.mxu0 0.0
    %1981 = vmatprep.subr.mxu0 0.0
    %1982 = vmatpush1.msra.mxu0 0.0
    %1983 = vmatprep.subr.mxu0 0.0
    %1984 = vmatpush1.msra.mxu0 0.0
    %1985 = vmatprep.subr.mxu0 0.0
    %1986 = vmatpush1.msra.mxu0 0.0
    %1987 = vmatprep.subr.mxu0 0.0
    %1988 = vmatpush1.msra.mxu0 0.0
    %1989 = vmatprep.subr.mxu0 0.0
    %1990 = vmatpush1.msra.mxu0 0.0
    %1991 = vmatprep.subr.mxu0 0.0
    %1992 = vmatpush1.msra.mxu0 0.0
    %1993 = vmatprep.subr.mxu0 0.0
    %1994 = vmatpush1.msra.mxu0 0.0
    %1995 = vmatprep.subr.mxu0 0.0
    %1996 = vmatpush1.msra.mxu0 0.0
    %1997 = vmatprep.subr.mxu0 0.0
    %1998 = vmatpush1.msra.mxu0 0.0
    %1999 = vmatprep.subr.mxu0 0.0
    %2000 = vmatpush1.msra.mxu0 0.0
    %2001 = vmatprep.subr.mxu0 0.0
    %2002 = vmatpush1.msra.mxu0 0.0
    %2003 = vmatprep.subr.mxu0 0.0
    %2004 = vmatpush1.msra.mxu0 0.0
    %2005 = vmatprep.subr.mxu0 0.0
    %2006 = vmatpush1.msra.mxu0 0.0
    %2007 = vmatprep.subr.mxu0 0.0
    %2008 = vmatpush1.msra.mxu0 0.0
    %2009 = vmatprep.subr.mxu0 0.0
    %2010 = vmatpush1.msra.mxu0 0.0
    %2011 = vmatprep.subr.mxu0 0.0
    %2012 = vmatpush1.msra.mxu0 0.0
    %2013 = vmatprep.subr.mxu0 0.0
    %2014 = vmatpush1.msra.mxu0 0.0
    %2015 = vmatprep.subr.mxu0 0.0
    %2016 = vmatpush1.msra.mxu0 0.0
    %2017 = vmatprep.subr.mxu0 0.0
    %2018 = vmatpush1.msra.mxu0 0.0
    %2019 = vmatprep.subr.mxu0 0.0
    %2020 = vmatpush1.msra.mxu0 0.0
    %2021 = vmatprep.subr.mxu0 0.0
    %2022 = vmatpush1.msra.mxu0 0.0
    %2023 = vmatprep.subr.mxu0 0.0
    %2024 = vmatpush1.msra.mxu0 0.0
    %2025 = vmatprep.mubr.f32.mxu0 0.0
    %v2026 = vand.u32 %v1957, 4294901760
    %v2027 = vsub.f32 %v1957, %v2026
    %v2028 = vand.u32 %v2027, 4294901760
    %v2029 = vsub.f32 %v2027, %v2028
    %v2030 = vand.u32 %v2029, 4294901760
    %2031 = vmatmul.mubr.f32.gmra.mrb[0].mxu0 %v2030
    %v2032 = vpop.f32.mrb[0].mxu0
    %v2033 = vadd.f32 %v1953, %v2032
    %v2034 = vpop.f32.mrb[0].mxu0
    %v2035 = vadd.f32 %v1953, %v2034
    %2036 = vdwg.mxu0
    %v2037 = vand.u32 %v1273, 4294901760
    %v2038 = vsub.f32 %v1273, %v2037
    %v2039 = vand.u32 %v2038, 4294901760
    %v2040 = vsub.f32 %v2038, %v2039
    %v2041 = vand.u32 %v2040, 4294901760
    %2042 = vmatprep.subr.mxu0 %v2041
    %v2043 = vand.u32 %v1271, 4294901760
    %v2044 = vsub.f32 %v1271, %v2043
    %v2045 = vand.u32 %v2044, 4294901760
    %v2046 = vsub.f32 %v2044, %v2045
    %v2047 = vand.u32 %v2046, 4294901760
    %2048 = vmatpush1.msra.mxu0 %v2047
    %2049 = vmatprep.subr.mxu0 0.0
    %2050 = vmatpush1.msra.mxu0 0.0
    %2051 = vmatprep.subr.mxu0 0.0
    %2052 = vmatpush1.msra.mxu0 0.0
    %2053 = vmatprep.subr.mxu0 0.0
    %2054 = vmatpush1.msra.mxu0 0.0
    %2055 = vmatprep.subr.mxu0 0.0
    %2056 = vmatpush1.msra.mxu0 0.0
    %2057 = vmatprep.subr.mxu0 0.0
    %2058 = vmatpush1.msra.mxu0 0.0
    %2059 = vmatprep.subr.mxu0 0.0
    %2060 = vmatpush1.msra.mxu0 0.0
    %2061 = vmatprep.subr.mxu0 0.0
    %2062 = vmatpush1.msra.mxu0 0.0
    %2063 = vmatprep.subr.mxu0 0.0
    %2064 = vmatpush1.msra.mxu0 0.0
    %2065 = vmatprep.subr.mxu0 0.0
    %2066 = vmatpush1.msra.mxu0 0.0
    %2067 = vmatprep.subr.mxu0 0.0
    %2068 = vmatpush1.msra.mxu0 0.0
    %2069 = vmatprep.subr.mxu0 0.0
    %2070 = vmatpush1.msra.mxu0 0.0
    %2071 = vmatprep.subr.mxu0 0.0
    %2072 = vmatpush1.msra.mxu0 0.0
    %2073 = vmatprep.subr.mxu0 0.0
    %2074 = vmatpush1.msra.mxu0 0.0
    %2075 = vmatprep.subr.mxu0 0.0
    %2076 = vmatpush1.msra.mxu0 0.0
    %2077 = vmatprep.subr.mxu0 0.0
    %2078 = vmatpush1.msra.mxu0 0.0
    %2079 = vmatprep.subr.mxu0 0.0
    %2080 = vmatpush1.msra.mxu0 0.0
    %2081 = vmatprep.subr.mxu0 0.0
    %2082 = vmatpush1.msra.mxu0 0.0
    %2083 = vmatprep.subr.mxu0 0.0
    %2084 = vmatpush1.msra.mxu0 0.0
    %2085 = vmatprep.subr.mxu0 0.0
    %2086 = vmatpush1.msra.mxu0 0.0
    %2087 = vmatprep.subr.mxu0 0.0
    %2088 = vmatpush1.msra.mxu0 0.0
    %2089 = vmatprep.subr.mxu0 0.0
    %2090 = vmatpush1.msra.mxu0 0.0
    %2091 = vmatprep.subr.mxu0 0.0
    %2092 = vmatpush1.msra.mxu0 0.0
    %2093 = vmatprep.subr.mxu0 0.0
    %2094 = vmatpush1.msra.mxu0 0.0
    %2095 = vmatprep.subr.mxu0 0.0
    %2096 = vmatpush1.msra.mxu0 0.0
    %2097 = vmatprep.subr.mxu0 0.0
    %2098 = vmatpush1.msra.mxu0 0.0
    %2099 = vmatprep.subr.mxu0 0.0
    %2100 = vmatpush1.msra.mxu0 0.0
    %2101 = vmatprep.subr.mxu0 0.0
    %2102 = vmatpush1.msra.mxu0 0.0
    %2103 = vmatprep.subr.mxu0 0.0
    %2104 = vmatpush1.msra.mxu0 0.0
    %2105 = vmatprep.subr.mxu0 0.0
    %2106 = vmatpush1.msra.mxu0 0.0
    %2107 = vmatprep.subr.mxu0 0.0
    %2108 = vmatpush1.msra.mxu0 0.0
    %2109 = vmatprep.subr.mxu0 0.0
    %2110 = vmatpush1.msra.mxu0 0.0
    %2111 = vmatprep.mubr.f32.mxu0 0.0
    %v2112 = vand.u32 %v1957, 4294901760
    %2113 = vmatmul.mubr.f32.gmra.mrb[0].mxu0 %v2112
    %v2114 = vpop.f32.mrb[0].mxu0
    %v2115 = vadd.f32 %v2033, %v2114
    %v2116 = vpop.f32.mrb[0].mxu0
    %v2117 = vadd.f32 %v2035, %v2116
    %2118 = vdwg.mxu0
    %v2119 = vand.u32 %v1273, 4294901760
    %v2120 = vsub.f32 %v1273, %v2119
    %2121 = vmatprep.subr.mxu0 %v2120
    %v2122 = vand.u32 %v1271, 4294901760
    %v2123 = vsub.f32 %v1271, %v2122
    %2124 = vmatpush1.msra.mxu0 %v2123
    %2125 = vmatprep.subr.mxu0 0.0
    %2126 = vmatpush1.msra.mxu0 0.0
    %2127 = vmatprep.subr.mxu0 0.0
    %2128 = vmatpush1.msra.mxu0 0.0
    %2129 = vmatprep.subr.mxu0 0.0
    %2130 = vmatpush1.msra.mxu0 0.0
    %2131 = vmatprep.subr.mxu0 0.0
    %2132 = vmatpush1.msra.mxu0 0.0
    %2133 = vmatprep.subr.mxu0 0.0
    %2134 = vmatpush1.msra.mxu0 0.0
    %2135 = vmatprep.subr.mxu0 0.0
    %2136 = vmatpush1.msra.mxu0 0.0
    %2137 = vmatprep.subr.mxu0 0.0
    %2138 = vmatpush1.msra.mxu0 0.0
    %2139 = vmatprep.subr.mxu0 0.0
    %2140 = vmatpush1.msra.mxu0 0.0
    %2141 = vmatprep.subr.mxu0 0.0
    %2142 = vmatpush1.msra.mxu0 0.0
    %2143 = vmatprep.subr.mxu0 0.0
    %2144 = vmatpush1.msra.mxu0 0.0
    %2145 = vmatprep.subr.mxu0 0.0
    %2146 = vmatpush1.msra.mxu0 0.0
    %2147 = vmatprep.subr.mxu0 0.0
    %2148 = vmatpush1.msra.mxu0 0.0
    %2149 = vmatprep.subr.mxu0 0.0
    %2150 = vmatpush1.msra.mxu0 0.0
    %2151 = vmatprep.subr.mxu0 0.0
    %2152 = vmatpush1.msra.mxu0 0.0
    %2153 = vmatprep.subr.mxu0 0.0
    %2154 = vmatpush1.msra.mxu0 0.0
    %2155 = vmatprep.subr.mxu0 0.0
    %2156 = vmatpush1.msra.mxu0 0.0
    %2157 = vmatprep.subr.mxu0 0.0
    %2158 = vmatpush1.msra.mxu0 0.0
    %2159 = vmatprep.subr.mxu0 0.0
    %2160 = vmatpush1.msra.mxu0 0.0
    %2161 = vmatprep.subr.mxu0 0.0
    %2162 = vmatpush1.msra.mxu0 0.0
    %2163 = vmatprep.subr.mxu0 0.0
    %2164 = vmatpush1.msra.mxu0 0.0
    %2165 = vmatprep.subr.mxu0 0.0
    %2166 = vmatpush1.msra.mxu0 0.0
    %2167 = vmatprep.subr.mxu0 0.0
    %2168 = vmatpush1.msra.mxu0 0.0
    %2169 = vmatprep.subr.mxu0 0.0
    %2170 = vmatpush1.msra.mxu0 0.0
    %2171 = vmatprep.subr.mxu0 0.0
    %2172 = vmatpush1.msra.mxu0 0.0
    %2173 = vmatprep.subr.mxu0 0.0
    %2174 = vmatpush1.msra.mxu0 0.0
    %2175 = vmatprep.subr.mxu0 0.0
    %2176 = vmatpush1.msra.mxu0 0.0
    %2177 = vmatprep.subr.mxu0 0.0
    %2178 = vmatpush1.msra.mxu0 0.0
    %2179 = vmatprep.subr.mxu0 0.0
    %2180 = vmatpush1.msra.mxu0 0.0
    %2181 = vmatprep.subr.mxu0 0.0
    %2182 = vmatpush1.msra.mxu0 0.0
    %2183 = vmatprep.subr.mxu0 0.0
    %2184 = vmatpush1.msra.mxu0 0.0
    %2185 = vmatprep.subr.mxu0 0.0
    %2186 = vmatpush1.msra.mxu0 0.0
    %2187 = vmatprep.mubr.f32.mxu0 0.0
    %v2188 = vand.u32 %v1957, 4294901760
    %v2189 = vsub.f32 %v1957, %v2188
    %2190 = vmatmul.mubr.f32.gmra.mrb[0].mxu0 %v2189
    %v2191 = vpop.f32.mrb[0].mxu0
    %v2192 = vadd.f32 %v2115, %v2191
    %v2193 = vpop.f32.mrb[0].mxu0
    %v2194 = vadd.f32 %v2117, %v2193
    %2195 = vdwg.mxu0
    %v2196 = vand.u32 %v1273, 4294901760
    %2197 = vmatprep.subr.mxu0 %v2196
    %v2198 = vand.u32 %v1271, 4294901760
    %2199 = vmatpush1.msra.mxu0 %v2198
    %2200 = vmatprep.subr.mxu0 0.0
    %2201 = vmatpush1.msra.mxu0 0.0
    %2202 = vmatprep.subr.mxu0 0.0
    %2203 = vmatpush1.msra.mxu0 0.0
    %2204 = vmatprep.subr.mxu0 0.0
    %2205 = vmatpush1.msra.mxu0 0.0
    %2206 = vmatprep.subr.mxu0 0.0
    %2207 = vmatpush1.msra.mxu0 0.0
    %2208 = vmatprep.subr.mxu0 0.0
    %2209 = vmatpush1.msra.mxu0 0.0
    %2210 = vmatprep.subr.mxu0 0.0
    %2211 = vmatpush1.msra.mxu0 0.0
    %2212 = vmatprep.subr.mxu0 0.0
    %2213 = vmatpush1.msra.mxu0 0.0
    %2214 = vmatprep.subr.mxu0 0.0
    %2215 = vmatpush1.msra.mxu0 0.0
    %2216 = vmatprep.subr.mxu0 0.0
    %2217 = vmatpush1.msra.mxu0 0.0
    %2218 = vmatprep.subr.mxu0 0.0
    %2219 = vmatpush1.msra.mxu0 0.0
    %2220 = vmatprep.subr.mxu0 0.0
    %2221 = vmatpush1.msra.mxu0 0.0
    %2222 = vmatprep.subr.mxu0 0.0
    %2223 = vmatpush1.msra.mxu0 0.0
    %2224 = vmatprep.subr.mxu0 0.0
    %2225 = vmatpush1.msra.mxu0 0.0
    %2226 = vmatprep.subr.mxu0 0.0
    %2227 = vmatpush1.msra.mxu0 0.0
    %2228 = vmatprep.subr.mxu0 0.0
    %2229 = vmatpush1.msra.mxu0 0.0
    %2230 = vmatprep.subr.mxu0 0.0
    %2231 = vmatpush1.msra.mxu0 0.0
    %2232 = vmatprep.subr.mxu0 0.0
    %2233 = vmatpush1.msra.mxu0 0.0
    %2234 = vmatprep.subr.mxu0 0.0
    %2235 = vmatpush1.msra.mxu0 0.0
    %2236 = vmatprep.subr.mxu0 0.0
    %2237 = vmatpush1.msra.mxu0 0.0
    %2238 = vmatprep.subr.mxu0 0.0
    %2239 = vmatpush1.msra.mxu0 0.0
    %2240 = vmatprep.subr.mxu0 0.0
    %2241 = vmatpush1.msra.mxu0 0.0
    %2242 = vmatprep.subr.mxu0 0.0
    %2243 = vmatpush1.msra.mxu0 0.0
    %2244 = vmatprep.subr.mxu0 0.0
    %2245 = vmatpush1.msra.mxu0 0.0
    %2246 = vmatprep.subr.mxu0 0.0
    %2247 = vmatpush1.msra.mxu0 0.0
    %2248 = vmatprep.subr.mxu0 0.0
    %2249 = vmatpush1.msra.mxu0 0.0
    %2250 = vmatprep.subr.mxu0 0.0
    %2251 = vmatpush1.msra.mxu0 0.0
    %2252 = vmatprep.subr.mxu0 0.0
    %2253 = vmatpush1.msra.mxu0 0.0
    %2254 = vmatprep.subr.mxu0 0.0
    %2255 = vmatpush1.msra.mxu0 0.0
    %2256 = vmatprep.subr.mxu0 0.0
    %2257 = vmatpush1.msra.mxu0 0.0
    %2258 = vmatprep.subr.mxu0 0.0
    %2259 = vmatpush1.msra.mxu0 0.0
    %2260 = vmatprep.subr.mxu0 0.0
    %2261 = vmatpush1.msra.mxu0 0.0
    %2262 = vmatprep.mubr.f32.mxu0 0.0
    %v2263 = vand.u32 %v1957, 4294901760
    %v2264 = vsub.f32 %v1957, %v2263
    %v2265 = vand.u32 %v2264, 4294901760
    %2266 = vmatmul.mubr.f32.gmra.mrb[0].mxu0 %v2265
    %v2267 = vpop.f32.mrb[0].mxu0
    %v2268 = vadd.f32 %v2192, %v2267
    %v2269 = vpop.f32.mrb[0].mxu0
    %v2270 = vadd.f32 %v2194, %v2269
    %2271 = vdwg.mxu0
    %v2272 = vand.u32 %v1273, 4294901760
    %v2273 = vsub.f32 %v1273, %v2272
    %v2274 = vand.u32 %v2273, 4294901760
    %2275 = vmatprep.subr.mxu0 %v2274
    %v2276 = vand.u32 %v1271, 4294901760
    %v2277 = vsub.f32 %v1271, %v2276
    %v2278 = vand.u32 %v2277, 4294901760
    %2279 = vmatpush1.msra.mxu0 %v2278
    %2280 = vmatprep.subr.mxu0 0.0
    %2281 = vmatpush1.msra.mxu0 0.0
    %2282 = vmatprep.subr.mxu0 0.0
    %2283 = vmatpush1.msra.mxu0 0.0
    %2284 = vmatprep.subr.mxu0 0.0
    %2285 = vmatpush1.msra.mxu0 0.0
    %2286 = vmatprep.subr.mxu0 0.0
    %2287 = vmatpush1.msra.mxu0 0.0
    %2288 = vmatprep.subr.mxu0 0.0
    %2289 = vmatpush1.msra.mxu0 0.0
    %2290 = vmatprep.subr.mxu0 0.0
    %2291 = vmatpush1.msra.mxu0 0.0
    %2292 = vmatprep.subr.mxu0 0.0
    %2293 = vmatpush1.msra.mxu0 0.0
    %2294 = vmatprep.subr.mxu0 0.0
    %2295 = vmatpush1.msra.mxu0 0.0
    %2296 = vmatprep.subr.mxu0 0.0
    %2297 = vmatpush1.msra.mxu0 0.0
    %2298 = vmatprep.subr.mxu0 0.0
    %2299 = vmatpush1.msra.mxu0 0.0
    %2300 = vmatprep.subr.mxu0 0.0
    %2301 = vmatpush1.msra.mxu0 0.0
    %2302 = vmatprep.subr.mxu0 0.0
    %2303 = vmatpush1.msra.mxu0 0.0
    %2304 = vmatprep.subr.mxu0 0.0
    %2305 = vmatpush1.msra.mxu0 0.0
    %2306 = vmatprep.subr.mxu0 0.0
    %2307 = vmatpush1.msra.mxu0 0.0
    %2308 = vmatprep.subr.mxu0 0.0
    %2309 = vmatpush1.msra.mxu0 0.0
    %2310 = vmatprep.subr.mxu0 0.0
    %2311 = vmatpush1.msra.mxu0 0.0
    %2312 = vmatprep.subr.mxu0 0.0
    %2313 = vmatpush1.msra.mxu0 0.0
    %2314 = vmatprep.subr.mxu0 0.0
    %2315 = vmatpush1.msra.mxu0 0.0
    %2316 = vmatprep.subr.mxu0 0.0
    %2317 = vmatpush1.msra.mxu0 0.0
    %2318 = vmatprep.subr.mxu0 0.0
    %2319 = vmatpush1.msra.mxu0 0.0
    %2320 = vmatprep.subr.mxu0 0.0
    %2321 = vmatpush1.msra.mxu0 0.0
    %2322 = vmatprep.subr.mxu0 0.0
    %2323 = vmatpush1.msra.mxu0 0.0
    %2324 = vmatprep.subr.mxu0 0.0
    %2325 = vmatpush1.msra.mxu0 0.0
    %2326 = vmatprep.subr.mxu0 0.0
    %2327 = vmatpush1.msra.mxu0 0.0
    %2328 = vmatprep.subr.mxu0 0.0
    %2329 = vmatpush1.msra.mxu0 0.0
    %2330 = vmatprep.subr.mxu0 0.0
    %2331 = vmatpush1.msra.mxu0 0.0
    %2332 = vmatprep.subr.mxu0 0.0
    %2333 = vmatpush1.msra.mxu0 0.0
    %2334 = vmatprep.subr.mxu0 0.0
    %2335 = vmatpush1.msra.mxu0 0.0
    %2336 = vmatprep.subr.mxu0 0.0
    %2337 = vmatpush1.msra.mxu0 0.0
    %2338 = vmatprep.subr.mxu0 0.0
    %2339 = vmatpush1.msra.mxu0 0.0
    %2340 = vmatprep.subr.mxu0 0.0
    %2341 = vmatpush1.msra.mxu0 0.0
    %2342 = vmatprep.mubr.f32.mxu0 0.0
    %v2343 = vand.u32 %v1957, 4294901760
    %2344 = vmatmul.mubr.f32.gmra.mrb[0].mxu0 %v2343
    %v2345 = vpop.f32.mrb[0].mxu0
    %v2346 = vadd.f32 %v2268, %v2345
    %v2347 = vpop.f32.mrb[0].mxu0
    %v2348 = vadd.f32 %v2270, %v2347
    %2349 = vdwg.mxu0
    %v2350 = vand.u32 %v1273, 4294901760
    %2351 = vmatprep.subr.mxu0 %v2350
    %v2352 = vand.u32 %v1271, 4294901760
    %2353 = vmatpush1.msra.mxu0 %v2352
    %2354 = vmatprep.subr.mxu0 0.0
    %2355 = vmatpush1.msra.mxu0 0.0
    %2356 = vmatprep.subr.mxu0 0.0
    %2357 = vmatpush1.msra.mxu0 0.0
    %2358 = vmatprep.subr.mxu0 0.0
    %2359 = vmatpush1.msra.mxu0 0.0
    %2360 = vmatprep.subr.mxu0 0.0
    %2361 = vmatpush1.msra.mxu0 0.0
    %2362 = vmatprep.subr.mxu0 0.0
    %2363 = vmatpush1.msra.mxu0 0.0
    %2364 = vmatprep.subr.mxu0 0.0
    %2365 = vmatpush1.msra.mxu0 0.0
    %2366 = vmatprep.subr.mxu0 0.0
    %2367 = vmatpush1.msra.mxu0 0.0
    %2368 = vmatprep.subr.mxu0 0.0
    %2369 = vmatpush1.msra.mxu0 0.0
    %2370 = vmatprep.subr.mxu0 0.0
    %2371 = vmatpush1.msra.mxu0 0.0
    %2372 = vmatprep.subr.mxu0 0.0
    %2373 = vmatpush1.msra.mxu0 0.0
    %2374 = vmatprep.subr.mxu0 0.0
    %2375 = vmatpush1.msra.mxu0 0.0
    %2376 = vmatprep.subr.mxu0 0.0
    %2377 = vmatpush1.msra.mxu0 0.0
    %2378 = vmatprep.subr.mxu0 0.0
    %2379 = vmatpush1.msra.mxu0 0.0
    %2380 = vmatprep.subr.mxu0 0.0
    %2381 = vmatpush1.msra.mxu0 0.0
    %2382 = vmatprep.subr.mxu0 0.0
    %2383 = vmatpush1.msra.mxu0 0.0
    %2384 = vmatprep.subr.mxu0 0.0
    %2385 = vmatpush1.msra.mxu0 0.0
    %2386 = vmatprep.subr.mxu0 0.0
    %2387 = vmatpush1.msra.mxu0 0.0
    %2388 = vmatprep.subr.mxu0 0.0
    %2389 = vmatpush1.msra.mxu0 0.0
    %2390 = vmatprep.subr.mxu0 0.0
    %2391 = vmatpush1.msra.mxu0 0.0
    %2392 = vmatprep.subr.mxu0 0.0
    %2393 = vmatpush1.msra.mxu0 0.0
    %2394 = vmatprep.subr.mxu0 0.0
    %2395 = vmatpush1.msra.mxu0 0.0
    %2396 = vmatprep.subr.mxu0 0.0
    %2397 = vmatpush1.msra.mxu0 0.0
    %2398 = vmatprep.subr.mxu0 0.0
    %2399 = vmatpush1.msra.mxu0 0.0
    %2400 = vmatprep.subr.mxu0 0.0
    %2401 = vmatpush1.msra.mxu0 0.0
    %2402 = vmatprep.subr.mxu0 0.0
    %2403 = vmatpush1.msra.mxu0 0.0
    %2404 = vmatprep.subr.mxu0 0.0
    %2405 = vmatpush1.msra.mxu0 0.0
    %2406 = vmatprep.subr.mxu0 0.0
    %2407 = vmatpush1.msra.mxu0 0.0
    %2408 = vmatprep.subr.mxu0 0.0
    %2409 = vmatpush1.msra.mxu0 0.0
    %2410 = vmatprep.subr.mxu0 0.0
    %2411 = vmatpush1.msra.mxu0 0.0
    %2412 = vmatprep.subr.mxu0 0.0
    %2413 = vmatpush1.msra.mxu0 0.0
    %2414 = vmatprep.subr.mxu0 0.0
    %2415 = vmatpush1.msra.mxu0 0.0
    %2416 = vmatprep.mubr.f32.mxu0 0.0
    %v2417 = vand.u32 %v1957, 4294901760
    %2418 = vmatmul.mubr.f32.gmra.mrb[0].mxu0 %v2417
    %v2419 = vpop.f32.mrb[0].mxu0
    %v2420 = vadd.f32 %v2346, %v2419
    %v2421 = vpop.f32.mrb[0].mxu0
    %v2422 = vadd.f32 %v2348, %v2421
    %2423 = vdwg.mxu0
    %v2424 = vand.u32 %v1946, 4294901760
    %2425 = vmatprep.subr.mxu0 %v2424
    %v2426 = vand.u32 %v1944, 4294901760
    %2427 = vmatpush1.msra.mxu0 %v2426
    %2428 = vmatprep.subr.mxu0 0.0
    %2429 = vmatpush1.msra.mxu0 0.0
    %2430 = vmatprep.subr.mxu0 0.0
    %2431 = vmatpush1.msra.mxu0 0.0
    %2432 = vmatprep.subr.mxu0 0.0
    %2433 = vmatpush1.msra.mxu0 0.0
    %2434 = vmatprep.subr.mxu0 0.0
    %2435 = vmatpush1.msra.mxu0 0.0
    %2436 = vmatprep.subr.mxu0 0.0
    %2437 = vmatpush1.msra.mxu0 0.0
    %2438 = vmatprep.subr.mxu0 0.0
    %2439 = vmatpush1.msra.mxu0 0.0
    %2440 = vmatprep.subr.mxu0 0.0
    %2441 = vmatpush1.msra.mxu0 0.0
    %2442 = vmatprep.subr.mxu0 0.0
    %2443 = vmatpush1.msra.mxu0 0.0
    %2444 = vmatprep.subr.mxu0 0.0
    %2445 = vmatpush1.msra.mxu0 0.0
    %2446 = vmatprep.subr.mxu0 0.0
    %2447 = vmatpush1.msra.mxu0 0.0
    %2448 = vmatprep.subr.mxu0 0.0
    %2449 = vmatpush1.msra.mxu0 0.0
    %2450 = vmatprep.subr.mxu0 0.0
    %2451 = vmatpush1.msra.mxu0 0.0
    %2452 = vmatprep.subr.mxu0 0.0
    %2453 = vmatpush1.msra.mxu0 0.0
    %2454 = vmatprep.subr.mxu0 0.0
    %2455 = vmatpush1.msra.mxu0 0.0
    %2456 = vmatprep.subr.mxu0 0.0
    %2457 = vmatpush1.msra.mxu0 0.0
    %2458 = vmatprep.subr.mxu0 0.0
    %2459 = vmatpush1.msra.mxu0 0.0
    %2460 = vmatprep.subr.mxu0 0.0
    %2461 = vmatpush1.msra.mxu0 0.0
    %2462 = vmatprep.subr.mxu0 0.0
    %2463 = vmatpush1.msra.mxu0 0.0
    %2464 = vmatprep.subr.mxu0 0.0
    %2465 = vmatpush1.msra.mxu0 0.0
    %2466 = vmatprep.subr.mxu0 0.0
    %2467 = vmatpush1.msra.mxu0 0.0
    %2468 = vmatprep.subr.mxu0 0.0
    %2469 = vmatpush1.msra.mxu0 0.0
    %2470 = vmatprep.subr.mxu0 0.0
    %2471 = vmatpush1.msra.mxu0 0.0
    %2472 = vmatprep.subr.mxu0 0.0
    %2473 = vmatpush1.msra.mxu0 0.0
    %2474 = vmatprep.subr.mxu0 0.0
    %2475 = vmatpush1.msra.mxu0 0.0
    %2476 = vmatprep.subr.mxu0 0.0
    %2477 = vmatpush1.msra.mxu0 0.0
    %2478 = vmatprep.subr.mxu0 0.0
    %2479 = vmatpush1.msra.mxu0 0.0
    %2480 = vmatprep.subr.mxu0 0.0
    %2481 = vmatpush1.msra.mxu0 0.0
    %2482 = vmatprep.subr.mxu0 0.0
    %2483 = vmatpush1.msra.mxu0 0.0
    %2484 = vmatprep.subr.mxu0 0.0
    %2485 = vmatpush1.msra.mxu0 0.0
    %2486 = vmatprep.subr.mxu0 0.0
    %2487 = vmatpush1.msra.mxu0 0.0
    %2488 = vmatprep.subr.mxu0 0.0
    %2489 = vmatpush1.msra.mxu0 0.0
    %2490 = vmatprep.mubr.f32.mxu0 0.0
    %v2491 = vand.u32 %v1957, 4294901760
    %v2492 = vsub.f32 %v1957, %v2491
    %v2493 = vand.u32 %v2492, 4294901760
    %v2494 = vsub.f32 %v2492, %v2493
    %v2495 = vand.u32 %v2494, 4294901760
    %2496 = vmatmul.mubr.f32.gmra.mrb[0].mxu0 %v2495
    %v2497 = vpop.f32.mrb[0].mxu0
    %v2498 = vadd.f32 %v1953, %v2497
    %v2499 = vpop.f32.mrb[0].mxu0
    %v2500 = vadd.f32 %v1953, %v2499
    %2501 = vdwg.mxu0
    %v2502 = vand.u32 %v1946, 4294901760
    %v2503 = vsub.f32 %v1946, %v2502
    %v2504 = vand.u32 %v2503, 4294901760
    %v2505 = vsub.f32 %v2503, %v2504
    %v2506 = vand.u32 %v2505, 4294901760
    %2507 = vmatprep.subr.mxu0 %v2506
    %v2508 = vand.u32 %v1944, 4294901760
    %v2509 = vsub.f32 %v1944, %v2508
    %v2510 = vand.u32 %v2509, 4294901760
    %v2511 = vsub.f32 %v2509, %v2510
    %v2512 = vand.u32 %v2511, 4294901760
    %2513 = vmatpush1.msra.mxu0 %v2512
    %2514 = vmatprep.subr.mxu0 0.0
    %2515 = vmatpush1.msra.mxu0 0.0
    %2516 = vmatprep.subr.mxu0 0.0
    %2517 = vmatpush1.msra.mxu0 0.0
    %2518 = vmatprep.subr.mxu0 0.0
    %2519 = vmatpush1.msra.mxu0 0.0
    %2520 = vmatprep.subr.mxu0 0.0
    %2521 = vmatpush1.msra.mxu0 0.0
    %2522 = vmatprep.subr.mxu0 0.0
    %2523 = vmatpush1.msra.mxu0 0.0
    %2524 = vmatprep.subr.mxu0 0.0
    %2525 = vmatpush1.msra.mxu0 0.0
    %2526 = vmatprep.subr.mxu0 0.0
    %2527 = vmatpush1.msra.mxu0 0.0
    %2528 = vmatprep.subr.mxu0 0.0
    %2529 = vmatpush1.msra.mxu0 0.0
    %2530 = vmatprep.subr.mxu0 0.0
    %2531 = vmatpush1.msra.mxu0 0.0
    %2532 = vmatprep.subr.mxu0 0.0
    %2533 = vmatpush1.msra.mxu0 0.0
    %2534 = vmatprep.subr.mxu0 0.0
    %2535 = vmatpush1.msra.mxu0 0.0
    %2536 = vmatprep.subr.mxu0 0.0
    %2537 = vmatpush1.msra.mxu0 0.0
    %2538 = vmatprep.subr.mxu0 0.0
    %2539 = vmatpush1.msra.mxu0 0.0
    %2540 = vmatprep.subr.mxu0 0.0
    %2541 = vmatpush1.msra.mxu0 0.0
    %2542 = vmatprep.subr.mxu0 0.0
    %2543 = vmatpush1.msra.mxu0 0.0
    %2544 = vmatprep.subr.mxu0 0.0
    %2545 = vmatpush1.msra.mxu0 0.0
    %2546 = vmatprep.subr.mxu0 0.0
    %2547 = vmatpush1.msra.mxu0 0.0
    %2548 = vmatprep.subr.mxu0 0.0
    %2549 = vmatpush1.msra.mxu0 0.0
    %2550 = vmatprep.subr.mxu0 0.0
    %2551 = vmatpush1.msra.mxu0 0.0
    %2552 = vmatprep.subr.mxu0 0.0
    %2553 = vmatpush1.msra.mxu0 0.0
    %2554 = vmatprep.subr.mxu0 0.0
    %2555 = vmatpush1.msra.mxu0 0.0
    %2556 = vmatprep.subr.mxu0 0.0
    %2557 = vmatpush1.msra.mxu0 0.0
    %2558 = vmatprep.subr.mxu0 0.0
    %2559 = vmatpush1.msra.mxu0 0.0
    %2560 = vmatprep.subr.mxu0 0.0
    %2561 = vmatpush1.msra.mxu0 0.0
    %2562 = vmatprep.subr.mxu0 0.0
    %2563 = vmatpush1.msra.mxu0 0.0
    %2564 = vmatprep.subr.mxu0 0.0
    %2565 = vmatpush1.msra.mxu0 0.0
    %2566 = vmatprep.subr.mxu0 0.0
    %2567 = vmatpush1.msra.mxu0 0.0
    %2568 = vmatprep.subr.mxu0 0.0
    %2569 = vmatpush1.msra.mxu0 0.0
    %2570 = vmatprep.subr.mxu0 0.0
    %2571 = vmatpush1.msra.mxu0 0.0
    %2572 = vmatprep.subr.mxu0 0.0
    %2573 = vmatpush1.msra.mxu0 0.0
    %2574 = vmatprep.subr.mxu0 0.0
    %2575 = vmatpush1.msra.mxu0 0.0
    %2576 = vmatprep.mubr.f32.mxu0 0.0
    %v2577 = vand.u32 %v1957, 4294901760
    %2578 = vmatmul.mubr.f32.gmra.mrb[0].mxu0 %v2577
    %v2579 = vpop.f32.mrb[0].mxu0
    %v2580 = vadd.f32 %v2498, %v2579
    %v2581 = vpop.f32.mrb[0].mxu0
    %v2582 = vadd.f32 %v2500, %v2581
    %2583 = vdwg.mxu0
    %v2584 = vand.u32 %v1946, 4294901760
    %v2585 = vsub.f32 %v1946, %v2584
    %2586 = vmatprep.subr.mxu0 %v2585
    %v2587 = vand.u32 %v1944, 4294901760
    %v2588 = vsub.f32 %v1944, %v2587
    %2589 = vmatpush1.msra.mxu0 %v2588
    %2590 = vmatprep.subr.mxu0 0.0
    %2591 = vmatpush1.msra.mxu0 0.0
    %2592 = vmatprep.subr.mxu0 0.0
    %2593 = vmatpush1.msra.mxu0 0.0
    %2594 = vmatprep.subr.mxu0 0.0
    %2595 = vmatpush1.msra.mxu0 0.0
    %2596 = vmatprep.subr.mxu0 0.0
    %2597 = vmatpush1.msra.mxu0 0.0
    %2598 = vmatprep.subr.mxu0 0.0
    %2599 = vmatpush1.msra.mxu0 0.0
    %2600 = vmatprep.subr.mxu0 0.0
    %2601 = vmatpush1.msra.mxu0 0.0
    %2602 = vmatprep.subr.mxu0 0.0
    %2603 = vmatpush1.msra.mxu0 0.0
    %2604 = vmatprep.subr.mxu0 0.0
    %2605 = vmatpush1.msra.mxu0 0.0
    %2606 = vmatprep.subr.mxu0 0.0
    %2607 = vmatpush1.msra.mxu0 0.0
    %2608 = vmatprep.subr.mxu0 0.0
    %2609 = vmatpush1.msra.mxu0 0.0
    %2610 = vmatprep.subr.mxu0 0.0
    %2611 = vmatpush1.msra.mxu0 0.0
    %2612 = vmatprep.subr.mxu0 0.0
    %2613 = vmatpush1.msra.mxu0 0.0
    %2614 = vmatprep.subr.mxu0 0.0
    %2615 = vmatpush1.msra.mxu0 0.0
    %2616 = vmatprep.subr.mxu0 0.0
    %2617 = vmatpush1.msra.mxu0 0.0
    %2618 = vmatprep.subr.mxu0 0.0
    %2619 = vmatpush1.msra.mxu0 0.0
    %2620 = vmatprep.subr.mxu0 0.0
    %2621 = vmatpush1.msra.mxu0 0.0
    %2622 = vmatprep.subr.mxu0 0.0
    %2623 = vmatpush1.msra.mxu0 0.0
    %2624 = vmatprep.subr.mxu0 0.0
    %2625 = vmatpush1.msra.mxu0 0.0
    %2626 = vmatprep.subr.mxu0 0.0
    %2627 = vmatpush1.msra.mxu0 0.0
    %2628 = vmatprep.subr.mxu0 0.0
    %2629 = vmatpush1.msra.mxu0 0.0
    %2630 = vmatprep.subr.mxu0 0.0
    %2631 = vmatpush1.msra.mxu0 0.0
    %2632 = vmatprep.subr.mxu0 0.0
    %2633 = vmatpush1.msra.mxu0 0.0
    %2634 = vmatprep.subr.mxu0 0.0
    %2635 = vmatpush1.msra.mxu0 0.0
    %2636 = vmatprep.subr.mxu0 0.0
    %2637 = vmatpush1.msra.mxu0 0.0
    %2638 = vmatprep.subr.mxu0 0.0
    %2639 = vmatpush1.msra.mxu0 0.0
    %2640 = vmatprep.subr.mxu0 0.0
    %2641 = vmatpush1.msra.mxu0 0.0
    %2642 = vmatprep.subr.mxu0 0.0
    %2643 = vmatpush1.msra.mxu0 0.0
    %2644 = vmatprep.subr.mxu0 0.0
    %2645 = vmatpush1.msra.mxu0 0.0
    %2646 = vmatprep.subr.mxu0 0.0
    %2647 = vmatpush1.msra.mxu0 0.0
    %2648 = vmatprep.subr.mxu0 0.0
    %2649 = vmatpush1.msra.mxu0 0.0
    %2650 = vmatprep.subr.mxu0 0.0
    %2651 = vmatpush1.msra.mxu0 0.0
    %2652 = vmatprep.mubr.f32.mxu0 0.0
    %v2653 = vand.u32 %v1957, 4294901760
    %v2654 = vsub.f32 %v1957, %v2653
    %2655 = vmatmul.mubr.f32.gmra.mrb[0].mxu0 %v2654
    %v2656 = vpop.f32.mrb[0].mxu0
    %v2657 = vadd.f32 %v2580, %v2656
    %v2658 = vpop.f32.mrb[0].mxu0
    %v2659 = vadd.f32 %v2582, %v2658
    %2660 = vdwg.mxu0
    %v2661 = vand.u32 %v1946, 4294901760
    %2662 = vmatprep.subr.mxu0 %v2661
    %v2663 = vand.u32 %v1944, 4294901760
    %2664 = vmatpush1.msra.mxu0 %v2663
    %2665 = vmatprep.subr.mxu0 0.0
    %2666 = vmatpush1.msra.mxu0 0.0
    %2667 = vmatprep.subr.mxu0 0.0
    %2668 = vmatpush1.msra.mxu0 0.0
    %2669 = vmatprep.subr.mxu0 0.0
    %2670 = vmatpush1.msra.mxu0 0.0
    %2671 = vmatprep.subr.mxu0 0.0
    %2672 = vmatpush1.msra.mxu0 0.0
    %2673 = vmatprep.subr.mxu0 0.0
    %2674 = vmatpush1.msra.mxu0 0.0
    %2675 = vmatprep.subr.mxu0 0.0
    %2676 = vmatpush1.msra.mxu0 0.0
    %2677 = vmatprep.subr.mxu0 0.0
    %2678 = vmatpush1.msra.mxu0 0.0
    %2679 = vmatprep.subr.mxu0 0.0
    %2680 = vmatpush1.msra.mxu0 0.0
    %2681 = vmatprep.subr.mxu0 0.0
    %2682 = vmatpush1.msra.mxu0 0.0
    %2683 = vmatprep.subr.mxu0 0.0
    %2684 = vmatpush1.msra.mxu0 0.0
    %2685 = vmatprep.subr.mxu0 0.0
    %2686 = vmatpush1.msra.mxu0 0.0
    %2687 = vmatprep.subr.mxu0 0.0
    %2688 = vmatpush1.msra.mxu0 0.0
    %2689 = vmatprep.subr.mxu0 0.0
    %2690 = vmatpush1.msra.mxu0 0.0
    %2691 = vmatprep.subr.mxu0 0.0
    %2692 = vmatpush1.msra.mxu0 0.0
    %2693 = vmatprep.subr.mxu0 0.0
    %2694 = vmatpush1.msra.mxu0 0.0
    %2695 = vmatprep.subr.mxu0 0.0
    %2696 = vmatpush1.msra.mxu0 0.0
    %2697 = vmatprep.subr.mxu0 0.0
    %2698 = vmatpush1.msra.mxu0 0.0
    %2699 = vmatprep.subr.mxu0 0.0
    %2700 = vmatpush1.msra.mxu0 0.0
    %2701 = vmatprep.subr.mxu0 0.0
    %2702 = vmatpush1.msra.mxu0 0.0
    %2703 = vmatprep.subr.mxu0 0.0
    %2704 = vmatpush1.msra.mxu0 0.0
    %2705 = vmatprep.subr.mxu0 0.0
    %2706 = vmatpush1.msra.mxu0 0.0
    %2707 = vmatprep.subr.mxu0 0.0
    %2708 = vmatpush1.msra.mxu0 0.0
    %2709 = vmatprep.subr.mxu0 0.0
    %2710 = vmatpush1.msra.mxu0 0.0
    %2711 = vmatprep.subr.mxu0 0.0
    %2712 = vmatpush1.msra.mxu0 0.0
    %2713 = vmatprep.subr.mxu0 0.0
    %2714 = vmatpush1.msra.mxu0 0.0
    %2715 = vmatprep.subr.mxu0 0.0
    %2716 = vmatpush1.msra.mxu0 0.0
    %2717 = vmatprep.subr.mxu0 0.0
    %2718 = vmatpush1.msra.mxu0 0.0
    %2719 = vmatprep.subr.mxu0 0.0
    %2720 = vmatpush1.msra.mxu0 0.0
    %2721 = vmatprep.subr.mxu0 0.0
    %2722 = vmatpush1.msra.mxu0 0.0
    %2723 = vmatprep.subr.mxu0 0.0
    %2724 = vmatpush1.msra.mxu0 0.0
    %2725 = vmatprep.subr.mxu0 0.0
    %2726 = vmatpush1.msra.mxu0 0.0
    %2727 = vmatprep.mubr.f32.mxu0 0.0
    %v2728 = vand.u32 %v1957, 4294901760
    %v2729 = vsub.f32 %v1957, %v2728
    %v2730 = vand.u32 %v2729, 4294901760
    %2731 = vmatmul.mubr.f32.gmra.mrb[0].mxu0 %v2730
    %v2732 = vpop.f32.mrb[0].mxu0
    %v2733 = vadd.f32 %v2657, %v2732
    %v2734 = vpop.f32.mrb[0].mxu0
    %v2735 = vadd.f32 %v2659, %v2734
    %2736 = vdwg.mxu0
    %v2737 = vand.u32 %v1946, 4294901760
    %v2738 = vsub.f32 %v1946, %v2737
    %v2739 = vand.u32 %v2738, 4294901760
    %2740 = vmatprep.subr.mxu0 %v2739
    %v2741 = vand.u32 %v1944, 4294901760
    %v2742 = vsub.f32 %v1944, %v2741
    %v2743 = vand.u32 %v2742, 4294901760
    %2744 = vmatpush1.msra.mxu0 %v2743
    %2745 = vmatprep.subr.mxu0 0.0
    %2746 = vmatpush1.msra.mxu0 0.0
    %2747 = vmatprep.subr.mxu0 0.0
    %2748 = vmatpush1.msra.mxu0 0.0
    %2749 = vmatprep.subr.mxu0 0.0
    %2750 = vmatpush1.msra.mxu0 0.0
    %2751 = vmatprep.subr.mxu0 0.0
    %2752 = vmatpush1.msra.mxu0 0.0
    %2753 = vmatprep.subr.mxu0 0.0
    %2754 = vmatpush1.msra.mxu0 0.0
    %2755 = vmatprep.subr.mxu0 0.0
    %2756 = vmatpush1.msra.mxu0 0.0
    %2757 = vmatprep.subr.mxu0 0.0
    %2758 = vmatpush1.msra.mxu0 0.0
    %2759 = vmatprep.subr.mxu0 0.0
    %2760 = vmatpush1.msra.mxu0 0.0
    %2761 = vmatprep.subr.mxu0 0.0
    %2762 = vmatpush1.msra.mxu0 0.0
    %2763 = vmatprep.subr.mxu0 0.0
    %2764 = vmatpush1.msra.mxu0 0.0
    %2765 = vmatprep.subr.mxu0 0.0
    %2766 = vmatpush1.msra.mxu0 0.0
    %2767 = vmatprep.subr.mxu0 0.0
    %2768 = vmatpush1.msra.mxu0 0.0
    %2769 = vmatprep.subr.mxu0 0.0
    %2770 = vmatpush1.msra.mxu0 0.0
    %2771 = vmatprep.subr.mxu0 0.0
    %2772 = vmatpush1.msra.mxu0 0.0
    %2773 = vmatprep.subr.mxu0 0.0
    %2774 = vmatpush1.msra.mxu0 0.0
    %2775 = vmatprep.subr.mxu0 0.0
    %2776 = vmatpush1.msra.mxu0 0.0
    %2777 = vmatprep.subr.mxu0 0.0
    %2778 = vmatpush1.msra.mxu0 0.0
    %2779 = vmatprep.subr.mxu0 0.0
    %2780 = vmatpush1.msra.mxu0 0.0
    %2781 = vmatprep.subr.mxu0 0.0
    %2782 = vmatpush1.msra.mxu0 0.0
    %2783 = vmatprep.subr.mxu0 0.0
    %2784 = vmatpush1.msra.mxu0 0.0
    %2785 = vmatprep.subr.mxu0 0.0
    %2786 = vmatpush1.msra.mxu0 0.0
    %2787 = vmatprep.subr.mxu0 0.0
    %2788 = vmatpush1.msra.mxu0 0.0
    %2789 = vmatprep.subr.mxu0 0.0
    %2790 = vmatpush1.msra.mxu0 0.0
    %2791 = vmatprep.subr.mxu0 0.0
    %2792 = vmatpush1.msra.mxu0 0.0
    %2793 = vmatprep.subr.mxu0 0.0
    %2794 = vmatpush1.msra.mxu0 0.0
    %2795 = vmatprep.subr.mxu0 0.0
    %2796 = vmatpush1.msra.mxu0 0.0
    %2797 = vmatprep.subr.mxu0 0.0
    %2798 = vmatpush1.msra.mxu0 0.0
    %2799 = vmatprep.subr.mxu0 0.0
    %2800 = vmatpush1.msra.mxu0 0.0
    %2801 = vmatprep.subr.mxu0 0.0
    %2802 = vmatpush1.msra.mxu0 0.0
    %2803 = vmatprep.subr.mxu0 0.0
    %2804 = vmatpush1.msra.mxu0 0.0
    %2805 = vmatprep.subr.mxu0 0.0
    %2806 = vmatpush1.msra.mxu0 0.0
    %2807 = vmatprep.mubr.f32.mxu0 0.0
    %v2808 = vand.u32 %v1957, 4294901760
    %2809 = vmatmul.mubr.f32.gmra.mrb[0].mxu0 %v2808
    %v2810 = vpop.f32.mrb[0].mxu0
    %v2811 = vadd.f32 %v2733, %v2810
    %v2812 = vpop.f32.mrb[0].mxu0
    %v2813 = vadd.f32 %v2735, %v2812
    %2814 = vdwg.mxu0
    %v2815 = vand.u32 %v1946, 4294901760
    %2816 = vmatprep.subr.mxu0 %v2815
    %v2817 = vand.u32 %v1944, 4294901760
    %2818 = vmatpush1.msra.mxu0 %v2817
    %2819 = vmatprep.subr.mxu0 0.0
    %2820 = vmatpush1.msra.mxu0 0.0
    %2821 = vmatprep.subr.mxu0 0.0
    %2822 = vmatpush1.msra.mxu0 0.0
    %2823 = vmatprep.subr.mxu0 0.0
    %2824 = vmatpush1.msra.mxu0 0.0
    %2825 = vmatprep.subr.mxu0 0.0
    %2826 = vmatpush1.msra.mxu0 0.0
    %2827 = vmatprep.subr.mxu0 0.0
    %2828 = vmatpush1.msra.mxu0 0.0
    %2829 = vmatprep.subr.mxu0 0.0
    %2830 = vmatpush1.msra.mxu0 0.0
    %2831 = vmatprep.subr.mxu0 0.0
    %2832 = vmatpush1.msra.mxu0 0.0
    %2833 = vmatprep.subr.mxu0 0.0
    %2834 = vmatpush1.msra.mxu0 0.0
    %2835 = vmatprep.subr.mxu0 0.0
    %2836 = vmatpush1.msra.mxu0 0.0
    %2837 = vmatprep.subr.mxu0 0.0
    %2838 = vmatpush1.msra.mxu0 0.0
    %2839 = vmatprep.subr.mxu0 0.0
    %2840 = vmatpush1.msra.mxu0 0.0
    %2841 = vmatprep.subr.mxu0 0.0
    %2842 = vmatpush1.msra.mxu0 0.0
    %2843 = vmatprep.subr.mxu0 0.0
    %2844 = vmatpush1.msra.mxu0 0.0
    %2845 = vmatprep.subr.mxu0 0.0
    %2846 = vmatpush1.msra.mxu0 0.0
    %2847 = vmatprep.subr.mxu0 0.0
    %2848 = vmatpush1.msra.mxu0 0.0
    %2849 = vmatprep.subr.mxu0 0.0
    %2850 = vmatpush1.msra.mxu0 0.0
    %2851 = vmatprep.subr.mxu0 0.0
    %2852 = vmatpush1.msra.mxu0 0.0
    %2853 = vmatprep.subr.mxu0 0.0
    %2854 = vmatpush1.msra.mxu0 0.0
    %2855 = vmatprep.subr.mxu0 0.0
    %2856 = vmatpush1.msra.mxu0 0.0
    %2857 = vmatprep.subr.mxu0 0.0
    %2858 = vmatpush1.msra.mxu0 0.0
    %2859 = vmatprep.subr.mxu0 0.0
    %2860 = vmatpush1.msra.mxu0 0.0
    %2861 = vmatprep.subr.mxu0 0.0
    %2862 = vmatpush1.msra.mxu0 0.0
    %2863 = vmatprep.subr.mxu0 0.0
    %2864 = vmatpush1.msra.mxu0 0.0
    %2865 = vmatprep.subr.mxu0 0.0
    %2866 = vmatpush1.msra.mxu0 0.0
    %2867 = vmatprep.subr.mxu0 0.0
    %2868 = vmatpush1.msra.mxu0 0.0
    %2869 = vmatprep.subr.mxu0 0.0
    %2870 = vmatpush1.msra.mxu0 0.0
    %2871 = vmatprep.subr.mxu0 0.0
    %2872 = vmatpush1.msra.mxu0 0.0
    %2873 = vmatprep.subr.mxu0 0.0
    %2874 = vmatpush1.msra.mxu0 0.0
    %2875 = vmatprep.subr.mxu0 0.0
    %2876 = vmatpush1.msra.mxu0 0.0
    %2877 = vmatprep.subr.mxu0 0.0
    %2878 = vmatpush1.msra.mxu0 0.0
    %2879 = vmatprep.subr.mxu0 0.0
    %2880 = vmatpush1.msra.mxu0 0.0
    %2881 = vmatprep.mubr.f32.mxu0 0.0
    %v2882 = vand.u32 %v1957, 4294901760
    %2883 = vmatmul.mubr.f32.gmra.mrb[0].mxu0 %v2882
    %v2884 = vpop.f32.mrb[0].mxu0
    %v2885 = vadd.f32 %v2811, %v2884
    %v2886 = vpop.f32.mrb[0].mxu0
    %v2887 = vadd.f32 %v2813, %v2886
    %2888 = vdwg.mxu0
    %2889 = vst [vmem:[#allocation9] sm:$0xff] %v2420
    %2890 = vst [vmem:[#allocation9 + $0x8] sm:$0xff] %v2422
    %s2891 = scalar_lea.vmem [#allocation9], 16
    %2892 = vst [vmem:[%s2891] sm:$0xff] %v2885
    %2893 = vst [vmem:[%s2891 + $0x8] sm:$0xff] %v2887
    // Predicated region
    $region30: #{tpu_custom_call.1} parent=1 // pred_check
      _
    $region31: #{tpu_custom_call.1} parent=1 // pred_check_branch
      %2895 = sbr.rel (0) target = $region33
    $region32: #{tpu_custom_call.1} parent=1 // pred_region
      %s2897 = ssub.s32 512, 512
      %2898 = vsyncadd [#allocation6], %s2897
      %s2899 = sshll.u32 [#allocation9], 4
      %s2900 = int_to_ptr.vmem [resolvable:$true] %s2899
      %2905 = dma.vmem_to_hbm [thread:$0]  %s2900, 512, %s5, [#allocation6], 256, 256, 16
    $region33: #{tpu_custom_call.1} parent=1 // pred_fallthru
      _
    // Predicated region
    $region34: #{tpu_custom_call.1} parent=1 // pred_check
      _
    $region35: #{tpu_custom_call.1} parent=1 // pred_check_branch
      %2907 = sbr.rel (0) target = $region37
    $region36: #{tpu_custom_call.1} parent=1 // pred_region
      %2908 = dma.done [#allocation6], 512
    $region37: #{tpu_custom_call.1} parent=1 // pred_fallthru
      _
    %2909 = vsyncpa [#allocation5], 1
    %2910 = vsyncpa [#allocation8], 1
    %2911 = vsyncpa [#allocation6], 1

</llo_original>
